<compile_context>
chip_gen: v7x
topology: tpu7x:2x2x1
jax: 0.10.0
libtpu: 0.0.40
codegen_flags: <defaults>
</compile_context>

<pallas_src>
import jax
import jax.numpy as jnp
from jax.experimental import pallas as pl
from jax.experimental.pallas import tpu as pltpu


def lstm_linear_kernel(x_ref, wih_ref, whh_ref, b_ref, wout_ref, bout_ref,
                       h0_ref, c0_ref, y_ref):
    """Full LSTM recurrence + output projection in one kernel.

    x_ref   : (B, S, I)   batch-first input (PyTorch layout, no wrapper transpose)
    wih_ref : (I, 4H)     input->gates weights  (pre-transposed)
    whh_ref : (H, 4H)     hidden->gates weights (pre-transposed)
    b_ref   : (1, 4H)     combined bias (b_ih + b_hh)
    wout_ref: (H, O)      linear head weights   (pre-transposed)
    bout_ref: (1, O)      linear head bias
    h0_ref  : (B, H)      initial hidden state
    c0_ref  : (B, H)      initial cell state
    y_ref   : (B, S, O)   output, batch-major (returned untouched by the wrapper)
    """
    B, S, I = x_ref.shape
    H = whh_ref.shape[0]

    whh = whh_ref[...]

    # ---- Hoisted input projection, vreg-resident. ---------------------------
    # Gather batch-first x into time-major rows at load time (row = t*B + b),
    # then one (S*B, I) @ (I, 4H) MXU matmul + bias.  gx stays in vregs.
    x_tm = jnp.concatenate([x_ref[:, t, :] for t in range(S)], axis=0)
    gx = (jnp.dot(x_tm, wih_ref[...], preferred_element_type=jnp.float32)
          + b_ref[...])                                        # (S*B, 4H)

    # Lane-scale for the single-tanh nonlinearity: 0.5 on i/f/o columns,
    # 1.0 on the g columns (PyTorch gate order i, f, g, o).
    col = jax.lax.broadcasted_iota(jnp.int32, (B, 4 * H), 1)
    is_g = jnp.logical_and(col >= 2 * H, col < 3 * H)
    gate_scale = jnp.where(is_g, jnp.float32(1.0), jnp.float32(0.5))

    # ---- Recurrence (fully unrolled; S is static). ---------------------------
    h = h0_ref[...]
    c = c0_ref[...]
    h_list = []
    for t in range(S):
        gates = (gx[t * B:(t + 1) * B, :]
                 + jnp.dot(h, whh, preferred_element_type=jnp.float32))  # (B,4H)
        tg = jnp.tanh(gates * gate_scale)       # one EUP push for the full vreg
        sig = tg * 0.5 + 0.5                    # sigmoid(x) = 0.5*tanh(x/2)+0.5
        i_g = sig[:, 0 * H:1 * H]
        f_g = sig[:, 1 * H:2 * H]
        g_g = tg[:, 2 * H:3 * H]
        o_g = sig[:, 3 * H:4 * H]
        c = f_g * c + i_g * g_g
        h = o_g * jnp.tanh(c)
        h_list.append(h)

    # ---- Hoisted output projection: one (S*B,H)@(H,O) matmul. ---------------
    h_all = jnp.concatenate(h_list, axis=0)                    # (S*B, H), vreg-resident
    y_tm = (jnp.dot(h_all, wout_ref[...], preferred_element_type=jnp.float32)
            + bout_ref[...]).astype(y_ref.dtype)               # (S*B, O)

    # Batch-major writeback (row (b,t) <- y_tm[t*B + b]); off the critical path.
    for t in range(S):
        y_ref[:, t, :] = y_tm[t * B:(t + 1) * B, :]


@jax.jit
def lstm_forward(x, wih_t, whh_t, b, wout_t, bout, h0, c0):
    """x: (batch, seq, input_size) -> y: (batch, seq, output_size)."""
    B, S, I = x.shape
    H = whh_t.shape[0]
    O = wout_t.shape[1]

    def full(shape):
        return pl.BlockSpec(shape, lambda i, _n=len(shape): (0,) * _n)

    return pl.pallas_call(
        lstm_linear_kernel,
        out_shape=jax.ShapeDtypeStruct((B, S, O), x.dtype),
        grid=(1,),
        in_specs=[
            full((B, S, I)),        # x (batch-first)
            full((I, 4 * H)),       # W_ih^T
            full((H, 4 * H)),       # W_hh^T
            full((1, 4 * H)),       # combined bias
            full((H, O)),           # W_out^T
            full((1, O)),           # b_out
            full((B, H)),           # h0
            full((B, H)),           # c0
        ],
        out_specs=full((B, S, O)),
        compiler_params=pltpu.CompilerParams(
            dimension_semantics=("arbitrary",)),
    )(x, wih_t, whh_t, b, wout_t, bout, h0, c0)


if __name__ == "__main__":
    # Module hyperparameters (small, consistent with the forward pass).
    input_size, hidden_size, seqlen, output_size = 16, 32, 8, 8
    batch = seqlen  # original module uses `seqlen` where PyTorch expects batch

    key = jax.random.PRNGKey(0)
    keys = jax.random.split(key, 10)
    k = 1.0 / jnp.sqrt(jnp.float32(hidden_size))

    # Deterministic parameter init (PyTorch-style uniform(-1/sqrt(H), 1/sqrt(H))).
    w_ih = jax.random.uniform(keys[0], (4 * hidden_size, input_size),
                              minval=-k, maxval=k, dtype=jnp.float32)
    w_hh = jax.random.uniform(keys[1], (4 * hidden_size, hidden_size),
                              minval=-k, maxval=k, dtype=jnp.float32)
    b_ih = jax.random.uniform(keys[2], (4 * hidden_size,),
                              minval=-k, maxval=k, dtype=jnp.float32)
    b_hh = jax.random.uniform(keys[3], (4 * hidden_size,),
                              minval=-k, maxval=k, dtype=jnp.float32)
    w_out = jax.random.uniform(keys[4], (output_size, hidden_size),
                               minval=-k, maxval=k, dtype=jnp.float32)
    b_out = jax.random.uniform(keys[5], (output_size,),
                               minval=-k, maxval=k, dtype=jnp.float32)

    # TODO(synk): the original module regenerates h0/c0 with torch.randn of shape
    # (n_layers=2, seqlen, H) every forward, which PyTorch would reject for its
    # 1-layer LSTM; we generate them deterministically with a fixed key and use
    # the layer-0 slice of shape (batch, H).
    h0 = jax.random.normal(keys[6], (2, batch, hidden_size), dtype=jnp.float32)[0]
    c0 = jax.random.normal(keys[7], (2, batch, hidden_size), dtype=jnp.float32)[0]

    x = jax.random.normal(keys[8], (batch, seqlen, input_size), dtype=jnp.float32)

    wih_t = w_ih.T                        # (I, 4H)
    whh_t = w_hh.T                        # (H, 4H)
    b_comb = (b_ih + b_hh)[None, :]       # (1, 4H)
    wout_t = w_out.T                      # (H, O)
    bout = b_out[None, :]                 # (1, O)

    y = lstm_forward(x, wih_t, whh_t, b_comb, wout_t, bout, h0, c0)
    y = jax.block_until_ready(y)

    # Pure-JAX reference (same gate order / semantics as torch.nn.LSTM + Linear).
    def ref_forward(x):
        H = hidden_size

        def cell(carry, x_t):
            h, c = carry
            gates = x_t @ w_ih.T + h @ w_hh.T + b_ih + b_hh
            i = jax.nn.sigmoid(gates[:, :H])
            f = jax.nn.sigmoid(gates[:, H:2 * H])
            g = jnp.tanh(gates[:, 2 * H:3 * H])
            o = jax.nn.sigmoid(gates[:, 3 * H:])
            c = f * c + i * g
            h = o * jnp.tanh(c)
            return (h, c), h

        _, hs = jax.lax.scan(cell, (h0, c0), jnp.transpose(x, (1, 0, 2)))
        out = jnp.transpose(hs, (1, 0, 2))  # (B, S, H)
        return out @ w_out.T + b_out

    y_ref = ref_forward(x)
    assert y.shape == (batch, seqlen, output_size), y.shape
    # Slightly relaxed vs 1e-5 to leave headroom for the tanh-based sigmoid.
    assert jnp.allclose(y, y_ref, atol=1e-4, rtol=1e-4), \
        float(jnp.max(jnp.abs(y - y_ref)))

    print("KERNEL_OK")
</pallas_src>

<mosaic_0001>
module attributes {stable_mosaic.version = 11 : i64} {
  func.func @lstm_linear_kernel(%arg0: i32, %arg1: memref<8x8x16xf32, #tpu.memory_space<vmem>>, %arg2: memref<16x128xf32, #tpu.memory_space<vmem>>, %arg3: memref<32x128xf32, #tpu.memory_space<vmem>>, %arg4: memref<1x128xf32, #tpu.memory_space<vmem>>, %arg5: memref<32x8xf32, #tpu.memory_space<vmem>>, %arg6: memref<1x8xf32, #tpu.memory_space<vmem>>, %arg7: memref<8x32xf32, #tpu.memory_space<vmem>>, %arg8: memref<8x32xf32, #tpu.memory_space<vmem>>, %arg9: memref<8x8x8xf32, #tpu.memory_space<vmem>>) attributes {dimension_semantics = [#tpu.dimension_semantics<arbitrary>], iteration_bounds = array<i64: 1>, scalar_prefetch = 0 : i64, scratch_operands = 0 : i64, tpu.core_type = #tpu.core_type<tc>, window_params = [{pipeline_mode = #tpu.pipeline_mode<synchronous>, transform_indices = @transform_0, window_bounds = array<i64: 8, 8, 16>}, {pipeline_mode = #tpu.pipeline_mode<synchronous>, transform_indices = @transform_1, window_bounds = array<i64: 16, 128>}, {pipeline_mode = #tpu.pipeline_mode<synchronous>, transform_indices = @transform_2, window_bounds = array<i64: 32, 128>}, {pipeline_mode = #tpu.pipeline_mode<synchronous>, transform_indices = @transform_3, window_bounds = array<i64: 1, 128>}, {pipeline_mode = #tpu.pipeline_mode<synchronous>, transform_indices = @transform_4, window_bounds = array<i64: 32, 8>}, {pipeline_mode = #tpu.pipeline_mode<synchronous>, transform_indices = @transform_5, window_bounds = array<i64: 1, 8>}, {pipeline_mode = #tpu.pipeline_mode<synchronous>, transform_indices = @transform_6, window_bounds = array<i64: 8, 32>}, {pipeline_mode = #tpu.pipeline_mode<synchronous>, transform_indices = @transform_7, window_bounds = array<i64: 8, 32>}, {pipeline_mode = #tpu.pipeline_mode<synchronous>, transform_indices = @transform_8, window_bounds = array<i64: 8, 8, 8>}]} {
    %c0 = arith.constant 0 : index
    %c0_0 = arith.constant 0 : index
    %0 = vector.load %arg3[%c0, %c0_0] : memref<32x128xf32, #tpu.memory_space<vmem>>, vector<32x128xf32>
    %c0_1 = arith.constant 0 : index
    %c0_2 = arith.constant 0 : index
    %c0_3 = arith.constant 0 : index
    %1 = vector.load %arg1[%c0_1, %c0_2, %c0_3] : memref<8x8x16xf32, #tpu.memory_space<vmem>>, vector<8x1x16xf32>
    %2 = vector.shape_cast %1 : vector<8x1x16xf32> to vector<8x16xf32>
    %c0_4 = arith.constant 0 : index
    %c1 = arith.constant 1 : index
    %c0_5 = arith.constant 0 : index
    %3 = vector.load %arg1[%c0_4, %c1, %c0_5] : memref<8x8x16xf32, #tpu.memory_space<vmem>>, vector<8x1x16xf32>
    %4 = vector.shape_cast %3 : vector<8x1x16xf32> to vector<8x16xf32>
    %c0_6 = arith.constant 0 : index
    %c2 = arith.constant 2 : index
    %c0_7 = arith.constant 0 : index
    %5 = vector.load %arg1[%c0_6, %c2, %c0_7] : memref<8x8x16xf32, #tpu.memory_space<vmem>>, vector<8x1x16xf32>
    %6 = vector.shape_cast %5 : vector<8x1x16xf32> to vector<8x16xf32>
    %c0_8 = arith.constant 0 : index
    %c3 = arith.constant 3 : index
    %c0_9 = arith.constant 0 : index
    %7 = vector.load %arg1[%c0_8, %c3, %c0_9] : memref<8x8x16xf32, #tpu.memory_space<vmem>>, vector<8x1x16xf32>
    %8 = vector.shape_cast %7 : vector<8x1x16xf32> to vector<8x16xf32>
    %c0_10 = arith.constant 0 : index
    %c4 = arith.constant 4 : index
    %c0_11 = arith.constant 0 : index
    %9 = vector.load %arg1[%c0_10, %c4, %c0_11] : memref<8x8x16xf32, #tpu.memory_space<vmem>>, vector<8x1x16xf32>
    %10 = vector.shape_cast %9 : vector<8x1x16xf32> to vector<8x16xf32>
    %c0_12 = arith.constant 0 : index
    %c5 = arith.constant 5 : index
    %c0_13 = arith.constant 0 : index
    %11 = vector.load %arg1[%c0_12, %c5, %c0_13] : memref<8x8x16xf32, #tpu.memory_space<vmem>>, vector<8x1x16xf32>
    %12 = vector.shape_cast %11 : vector<8x1x16xf32> to vector<8x16xf32>
    %c0_14 = arith.constant 0 : index
    %c6 = arith.constant 6 : index
    %c0_15 = arith.constant 0 : index
    %13 = vector.load %arg1[%c0_14, %c6, %c0_15] : memref<8x8x16xf32, #tpu.memory_space<vmem>>, vector<8x1x16xf32>
    %14 = vector.shape_cast %13 : vector<8x1x16xf32> to vector<8x16xf32>
    %c0_16 = arith.constant 0 : index
    %c7 = arith.constant 7 : index
    %c0_17 = arith.constant 0 : index
    %15 = vector.load %arg1[%c0_16, %c7, %c0_17] : memref<8x8x16xf32, #tpu.memory_space<vmem>>, vector<8x1x16xf32>
    %16 = vector.shape_cast %15 : vector<8x1x16xf32> to vector<8x16xf32>
    %17 = tpu.concatenate %2, %4, %6, %8, %10, %12, %14, %16 in 0 : vector<8x16xf32>, vector<8x16xf32>, vector<8x16xf32>, vector<8x16xf32>, vector<8x16xf32>, vector<8x16xf32>, vector<8x16xf32>, vector<8x16xf32> -> vector<64x16xf32>
    %c0_18 = arith.constant 0 : index
    %c0_19 = arith.constant 0 : index
    %18 = vector.load %arg2[%c0_18, %c0_19] : memref<16x128xf32, #tpu.memory_space<vmem>>, vector<16x128xf32>
    %cst = arith.constant dense<0.000000e+00> : vector<64x128xf32>
    %19 = tpu.matmul %17, %18, %cst {dimension_numbers = #tpu.dot_dimension_numbers<[1], [0], [0], [1], [0, 0, 1, 1], [], []>} : vector<64x16xf32>, vector<16x128xf32>, vector<64x128xf32> -> vector<64x128xf32>
    %c0_20 = arith.constant 0 : index
    %c0_21 = arith.constant 0 : index
    %20 = vector.load %arg4[%c0_20, %c0_21] : memref<1x128xf32, #tpu.memory_space<vmem>>, vector<1x128xf32>
    %21 = vector.broadcast %20 : vector<1x128xf32> to vector<64x128xf32>
    %22 = arith.addf %19, %21 : vector<64x128xf32>
    %23 = tpu.iota {dimensions = array<i32: 1>} : vector<8x128xi32>
    %c64_i32 = arith.constant 64 : i32
    %24 = vector.broadcast %c64_i32 : i32 to vector<8x128xi32>
    %25 = arith.cmpi sge, %23, %24 : vector<8x128xi32>
    %c96_i32 = arith.constant 96 : i32
    %26 = vector.broadcast %c96_i32 : i32 to vector<8x128xi32>
    %27 = arith.cmpi slt, %23, %26 : vector<8x128xi32>
    %28 = arith.andi %25, %27 : vector<8x128xi1>
    %cst_22 = arith.constant 1.000000e+00 : f32
    %cst_23 = arith.constant 5.000000e-01 : f32
    %29 = vector.broadcast %cst_22 : f32 to vector<8x128xf32>
    %30 = vector.broadcast %cst_23 : f32 to vector<8x128xf32>
    %31 = arith.select %28, %29, %30 : vector<8x128xi1>, vector<8x128xf32>
    %c0_24 = arith.constant 0 : index
    %c0_25 = arith.constant 0 : index
    %32 = vector.load %arg7[%c0_24, %c0_25] : memref<8x32xf32, #tpu.memory_space<vmem>>, vector<8x32xf32>
    %c0_26 = arith.constant 0 : index
    %c0_27 = arith.constant 0 : index
    %33 = vector.load %arg8[%c0_26, %c0_27] : memref<8x32xf32, #tpu.memory_space<vmem>>, vector<8x32xf32>
    %34 = vector.extract_strided_slice %22 {offsets = [0, 0], sizes = [8, 128], strides = [1, 1]} : vector<64x128xf32> to vector<8x128xf32>
    %cst_28 = arith.constant dense<0.000000e+00> : vector<8x128xf32>
    %35 = tpu.matmul %32, %0, %cst_28 {dimension_numbers = #tpu.dot_dimension_numbers<[1], [0], [0], [1], [0, 0, 1, 1], [], []>} : vector<8x32xf32>, vector<32x128xf32>, vector<8x128xf32> -> vector<8x128xf32>
    %36 = arith.addf %34, %35 : vector<8x128xf32>
    %37 = arith.mulf %36, %31 : vector<8x128xf32>
    %38 = math.tanh %37 : vector<8x128xf32>
    %cst_29 = arith.constant 5.000000e-01 : f32
    %39 = vector.broadcast %cst_29 : f32 to vector<8x128xf32>
    %40 = arith.mulf %38, %39 : vector<8x128xf32>
    %cst_30 = arith.constant 5.000000e-01 : f32
    %41 = vector.broadcast %cst_30 : f32 to vector<8x128xf32>
    %42 = arith.addf %40, %41 : vector<8x128xf32>
    %43 = vector.extract_strided_slice %42 {offsets = [0, 0], sizes = [8, 32], strides = [1, 1]} : vector<8x128xf32> to vector<8x32xf32>
    %44 = vector.extract_strided_slice %42 {offsets = [0, 32], sizes = [8, 32], strides = [1, 1]} : vector<8x128xf32> to vector<8x32xf32>
    %45 = vector.extract_strided_slice %38 {offsets = [0, 64], sizes = [8, 32], strides = [1, 1]} : vector<8x128xf32> to vector<8x32xf32>
    %46 = vector.extract_strided_slice %42 {offsets = [0, 96], sizes = [8, 32], strides = [1, 1]} : vector<8x128xf32> to vector<8x32xf32>
    %47 = arith.mulf %44, %33 : vector<8x32xf32>
    %48 = arith.mulf %43, %45 : vector<8x32xf32>
    %49 = arith.addf %47, %48 : vector<8x32xf32>
    %50 = math.tanh %49 : vector<8x32xf32>
    %51 = arith.mulf %46, %50 : vector<8x32xf32>
    %52 = vector.extract_strided_slice %22 {offsets = [8, 0], sizes = [8, 128], strides = [1, 1]} : vector<64x128xf32> to vector<8x128xf32>
    %cst_31 = arith.constant dense<0.000000e+00> : vector<8x128xf32>
    %53 = tpu.matmul %51, %0, %cst_31 {dimension_numbers = #tpu.dot_dimension_numbers<[1], [0], [0], [1], [0, 0, 1, 1], [], []>} : vector<8x32xf32>, vector<32x128xf32>, vector<8x128xf32> -> vector<8x128xf32>
    %54 = arith.addf %52, %53 : vector<8x128xf32>
    %55 = arith.mulf %54, %31 : vector<8x128xf32>
    %56 = math.tanh %55 : vector<8x128xf32>
    %cst_32 = arith.constant 5.000000e-01 : f32
    %57 = vector.broadcast %cst_32 : f32 to vector<8x128xf32>
    %58 = arith.mulf %56, %57 : vector<8x128xf32>
    %cst_33 = arith.constant 5.000000e-01 : f32
    %59 = vector.broadcast %cst_33 : f32 to vector<8x128xf32>
    %60 = arith.addf %58, %59 : vector<8x128xf32>
    %61 = vector.extract_strided_slice %60 {offsets = [0, 0], sizes = [8, 32], strides = [1, 1]} : vector<8x128xf32> to vector<8x32xf32>
    %62 = vector.extract_strided_slice %60 {offsets = [0, 32], sizes = [8, 32], strides = [1, 1]} : vector<8x128xf32> to vector<8x32xf32>
    %63 = vector.extract_strided_slice %56 {offsets = [0, 64], sizes = [8, 32], strides = [1, 1]} : vector<8x128xf32> to vector<8x32xf32>
    %64 = vector.extract_strided_slice %60 {offsets = [0, 96], sizes = [8, 32], strides = [1, 1]} : vector<8x128xf32> to vector<8x32xf32>
    %65 = arith.mulf %62, %49 : vector<8x32xf32>
    %66 = arith.mulf %61, %63 : vector<8x32xf32>
    %67 = arith.addf %65, %66 : vector<8x32xf32>
    %68 = math.tanh %67 : vector<8x32xf32>
    %69 = arith.mulf %64, %68 : vector<8x32xf32>
    %70 = vector.extract_strided_slice %22 {offsets = [16, 0], sizes = [8, 128], strides = [1, 1]} : vector<64x128xf32> to vector<8x128xf32>
    %cst_34 = arith.constant dense<0.000000e+00> : vector<8x128xf32>
    %71 = tpu.matmul %69, %0, %cst_34 {dimension_numbers = #tpu.dot_dimension_numbers<[1], [0], [0], [1], [0, 0, 1, 1], [], []>} : vector<8x32xf32>, vector<32x128xf32>, vector<8x128xf32> -> vector<8x128xf32>
    %72 = arith.addf %70, %71 : vector<8x128xf32>
    %73 = arith.mulf %72, %31 : vector<8x128xf32>
    %74 = math.tanh %73 : vector<8x128xf32>
    %cst_35 = arith.constant 5.000000e-01 : f32
    %75 = vector.broadcast %cst_35 : f32 to vector<8x128xf32>
    %76 = arith.mulf %74, %75 : vector<8x128xf32>
    %cst_36 = arith.constant 5.000000e-01 : f32
    %77 = vector.broadcast %cst_36 : f32 to vector<8x128xf32>
    %78 = arith.addf %76, %77 : vector<8x128xf32>
    %79 = vector.extract_strided_slice %78 {offsets = [0, 0], sizes = [8, 32], strides = [1, 1]} : vector<8x128xf32> to vector<8x32xf32>
    %80 = vector.extract_strided_slice %78 {offsets = [0, 32], sizes = [8, 32], strides = [1, 1]} : vector<8x128xf32> to vector<8x32xf32>
    %81 = vector.extract_strided_slice %74 {offsets = [0, 64], sizes = [8, 32], strides = [1, 1]} : vector<8x128xf32> to vector<8x32xf32>
    %82 = vector.extract_strided_slice %78 {offsets = [0, 96], sizes = [8, 32], strides = [1, 1]} : vector<8x128xf32> to vector<8x32xf32>
    %83 = arith.mulf %80, %67 : vector<8x32xf32>
    %84 = arith.mulf %79, %81 : vector<8x32xf32>
    %85 = arith.addf %83, %84 : vector<8x32xf32>
    %86 = math.tanh %85 : vector<8x32xf32>
    %87 = arith.mulf %82, %86 : vector<8x32xf32>
    %88 = vector.extract_strided_slice %22 {offsets = [24, 0], sizes = [8, 128], strides = [1, 1]} : vector<64x128xf32> to vector<8x128xf32>
    %cst_37 = arith.constant dense<0.000000e+00> : vector<8x128xf32>
    %89 = tpu.matmul %87, %0, %cst_37 {dimension_numbers = #tpu.dot_dimension_numbers<[1], [0], [0], [1], [0, 0, 1, 1], [], []>} : vector<8x32xf32>, vector<32x128xf32>, vector<8x128xf32> -> vector<8x128xf32>
    %90 = arith.addf %88, %89 : vector<8x128xf32>
    %91 = arith.mulf %90, %31 : vector<8x128xf32>
    %92 = math.tanh %91 : vector<8x128xf32>
    %cst_38 = arith.constant 5.000000e-01 : f32
    %93 = vector.broadcast %cst_38 : f32 to vector<8x128xf32>
    %94 = arith.mulf %92, %93 : vector<8x128xf32>
    %cst_39 = arith.constant 5.000000e-01 : f32
    %95 = vector.broadcast %cst_39 : f32 to vector<8x128xf32>
    %96 = arith.addf %94, %95 : vector<8x128xf32>
    %97 = vector.extract_strided_slice %96 {offsets = [0, 0], sizes = [8, 32], strides = [1, 1]} : vector<8x128xf32> to vector<8x32xf32>
    %98 = vector.extract_strided_slice %96 {offsets = [0, 32], sizes = [8, 32], strides = [1, 1]} : vector<8x128xf32> to vector<8x32xf32>
    %99 = vector.extract_strided_slice %92 {offsets = [0, 64], sizes = [8, 32], strides = [1, 1]} : vector<8x128xf32> to vector<8x32xf32>
    %100 = vector.extract_strided_slice %96 {offsets = [0, 96], sizes = [8, 32], strides = [1, 1]} : vector<8x128xf32> to vector<8x32xf32>
    %101 = arith.mulf %98, %85 : vector<8x32xf32>
    %102 = arith.mulf %97, %99 : vector<8x32xf32>
    %103 = arith.addf %101, %102 : vector<8x32xf32>
    %104 = math.tanh %103 : vector<8x32xf32>
    %105 = arith.mulf %100, %104 : vector<8x32xf32>
    %106 = vector.extract_strided_slice %22 {offsets = [32, 0], sizes = [8, 128], strides = [1, 1]} : vector<64x128xf32> to vector<8x128xf32>
    %cst_40 = arith.constant dense<0.000000e+00> : vector<8x128xf32>
    %107 = tpu.matmul %105, %0, %cst_40 {dimension_numbers = #tpu.dot_dimension_numbers<[1], [0], [0], [1], [0, 0, 1, 1], [], []>} : vector<8x32xf32>, vector<32x128xf32>, vector<8x128xf32> -> vector<8x128xf32>
    %108 = arith.addf %106, %107 : vector<8x128xf32>
    %109 = arith.mulf %108, %31 : vector<8x128xf32>
    %110 = math.tanh %109 : vector<8x128xf32>
    %cst_41 = arith.constant 5.000000e-01 : f32
    %111 = vector.broadcast %cst_41 : f32 to vector<8x128xf32>
    %112 = arith.mulf %110, %111 : vector<8x128xf32>
    %cst_42 = arith.constant 5.000000e-01 : f32
    %113 = vector.broadcast %cst_42 : f32 to vector<8x128xf32>
    %114 = arith.addf %112, %113 : vector<8x128xf32>
    %115 = vector.extract_strided_slice %114 {offsets = [0, 0], sizes = [8, 32], strides = [1, 1]} : vector<8x128xf32> to vector<8x32xf32>
    %116 = vector.extract_strided_slice %114 {offsets = [0, 32], sizes = [8, 32], strides = [1, 1]} : vector<8x128xf32> to vector<8x32xf32>
    %117 = vector.extract_strided_slice %110 {offsets = [0, 64], sizes = [8, 32], strides = [1, 1]} : vector<8x128xf32> to vector<8x32xf32>
    %118 = vector.extract_strided_slice %114 {offsets = [0, 96], sizes = [8, 32], strides = [1, 1]} : vector<8x128xf32> to vector<8x32xf32>
    %119 = arith.mulf %116, %103 : vector<8x32xf32>
    %120 = arith.mulf %115, %117 : vector<8x32xf32>
    %121 = arith.addf %119, %120 : vector<8x32xf32>
    %122 = math.tanh %121 : vector<8x32xf32>
    %123 = arith.mulf %118, %122 : vector<8x32xf32>
    %124 = vector.extract_strided_slice %22 {offsets = [40, 0], sizes = [8, 128], strides = [1, 1]} : vector<64x128xf32> to vector<8x128xf32>
    %cst_43 = arith.constant dense<0.000000e+00> : vector<8x128xf32>
    %125 = tpu.matmul %123, %0, %cst_43 {dimension_numbers = #tpu.dot_dimension_numbers<[1], [0], [0], [1], [0, 0, 1, 1], [], []>} : vector<8x32xf32>, vector<32x128xf32>, vector<8x128xf32> -> vector<8x128xf32>
    %126 = arith.addf %124, %125 : vector<8x128xf32>
    %127 = arith.mulf %126, %31 : vector<8x128xf32>
    %128 = math.tanh %127 : vector<8x128xf32>
    %cst_44 = arith.constant 5.000000e-01 : f32
    %129 = vector.broadcast %cst_44 : f32 to vector<8x128xf32>
    %130 = arith.mulf %128, %129 : vector<8x128xf32>
    %cst_45 = arith.constant 5.000000e-01 : f32
    %131 = vector.broadcast %cst_45 : f32 to vector<8x128xf32>
    %132 = arith.addf %130, %131 : vector<8x128xf32>
    %133 = vector.extract_strided_slice %132 {offsets = [0, 0], sizes = [8, 32], strides = [1, 1]} : vector<8x128xf32> to vector<8x32xf32>
    %134 = vector.extract_strided_slice %132 {offsets = [0, 32], sizes = [8, 32], strides = [1, 1]} : vector<8x128xf32> to vector<8x32xf32>
    %135 = vector.extract_strided_slice %128 {offsets = [0, 64], sizes = [8, 32], strides = [1, 1]} : vector<8x128xf32> to vector<8x32xf32>
    %136 = vector.extract_strided_slice %132 {offsets = [0, 96], sizes = [8, 32], strides = [1, 1]} : vector<8x128xf32> to vector<8x32xf32>
    %137 = arith.mulf %134, %121 : vector<8x32xf32>
    %138 = arith.mulf %133, %135 : vector<8x32xf32>
    %139 = arith.addf %137, %138 : vector<8x32xf32>
    %140 = math.tanh %139 : vector<8x32xf32>
    %141 = arith.mulf %136, %140 : vector<8x32xf32>
    %142 = vector.extract_strided_slice %22 {offsets = [48, 0], sizes = [8, 128], strides = [1, 1]} : vector<64x128xf32> to vector<8x128xf32>
    %cst_46 = arith.constant dense<0.000000e+00> : vector<8x128xf32>
    %143 = tpu.matmul %141, %0, %cst_46 {dimension_numbers = #tpu.dot_dimension_numbers<[1], [0], [0], [1], [0, 0, 1, 1], [], []>} : vector<8x32xf32>, vector<32x128xf32>, vector<8x128xf32> -> vector<8x128xf32>
    %144 = arith.addf %142, %143 : vector<8x128xf32>
    %145 = arith.mulf %144, %31 : vector<8x128xf32>
    %146 = math.tanh %145 : vector<8x128xf32>
    %cst_47 = arith.constant 5.000000e-01 : f32
    %147 = vector.broadcast %cst_47 : f32 to vector<8x128xf32>
    %148 = arith.mulf %146, %147 : vector<8x128xf32>
    %cst_48 = arith.constant 5.000000e-01 : f32
    %149 = vector.broadcast %cst_48 : f32 to vector<8x128xf32>
    %150 = arith.addf %148, %149 : vector<8x128xf32>
    %151 = vector.extract_strided_slice %150 {offsets = [0, 0], sizes = [8, 32], strides = [1, 1]} : vector<8x128xf32> to vector<8x32xf32>
    %152 = vector.extract_strided_slice %150 {offsets = [0, 32], sizes = [8, 32], strides = [1, 1]} : vector<8x128xf32> to vector<8x32xf32>
    %153 = vector.extract_strided_slice %146 {offsets = [0, 64], sizes = [8, 32], strides = [1, 1]} : vector<8x128xf32> to vector<8x32xf32>
    %154 = vector.extract_strided_slice %150 {offsets = [0, 96], sizes = [8, 32], strides = [1, 1]} : vector<8x128xf32> to vector<8x32xf32>
    %155 = arith.mulf %152, %139 : vector<8x32xf32>
    %156 = arith.mulf %151, %153 : vector<8x32xf32>
    %157 = arith.addf %155, %156 : vector<8x32xf32>
    %158 = math.tanh %157 : vector<8x32xf32>
    %159 = arith.mulf %154, %158 : vector<8x32xf32>
    %160 = vector.extract_strided_slice %22 {offsets = [56, 0], sizes = [8, 128], strides = [1, 1]} : vector<64x128xf32> to vector<8x128xf32>
    %cst_49 = arith.constant dense<0.000000e+00> : vector<8x128xf32>
    %161 = tpu.matmul %159, %0, %cst_49 {dimension_numbers = #tpu.dot_dimension_numbers<[1], [0], [0], [1], [0, 0, 1, 1], [], []>} : vector<8x32xf32>, vector<32x128xf32>, vector<8x128xf32> -> vector<8x128xf32>
    %162 = arith.addf %160, %161 : vector<8x128xf32>
    %163 = arith.mulf %162, %31 : vector<8x128xf32>
    %164 = math.tanh %163 : vector<8x128xf32>
    %cst_50 = arith.constant 5.000000e-01 : f32
    %165 = vector.broadcast %cst_50 : f32 to vector<8x128xf32>
    %166 = arith.mulf %164, %165 : vector<8x128xf32>
    %cst_51 = arith.constant 5.000000e-01 : f32
    %167 = vector.broadcast %cst_51 : f32 to vector<8x128xf32>
    %168 = arith.addf %166, %167 : vector<8x128xf32>
    %169 = vector.extract_strided_slice %168 {offsets = [0, 0], sizes = [8, 32], strides = [1, 1]} : vector<8x128xf32> to vector<8x32xf32>
    %170 = vector.extract_strided_slice %168 {offsets = [0, 32], sizes = [8, 32], strides = [1, 1]} : vector<8x128xf32> to vector<8x32xf32>
    %171 = vector.extract_strided_slice %164 {offsets = [0, 64], sizes = [8, 32], strides = [1, 1]} : vector<8x128xf32> to vector<8x32xf32>
    %172 = vector.extract_strided_slice %168 {offsets = [0, 96], sizes = [8, 32], strides = [1, 1]} : vector<8x128xf32> to vector<8x32xf32>
    %173 = arith.mulf %170, %157 : vector<8x32xf32>
    %174 = arith.mulf %169, %171 : vector<8x32xf32>
    %175 = arith.addf %173, %174 : vector<8x32xf32>
    %176 = math.tanh %175 : vector<8x32xf32>
    %177 = arith.mulf %172, %176 : vector<8x32xf32>
    %178 = tpu.concatenate %51, %69, %87, %105, %123, %141, %159, %177 in 0 : vector<8x32xf32>, vector<8x32xf32>, vector<8x32xf32>, vector<8x32xf32>, vector<8x32xf32>, vector<8x32xf32>, vector<8x32xf32>, vector<8x32xf32> -> vector<64x32xf32>
    %c0_52 = arith.constant 0 : index
    %c0_53 = arith.constant 0 : index
    %179 = vector.load %arg5[%c0_52, %c0_53] : memref<32x8xf32, #tpu.memory_space<vmem>>, vector<32x8xf32>
    %cst_54 = arith.constant dense<0.000000e+00> : vector<64x8xf32>
    %180 = tpu.matmul %178, %179, %cst_54 {dimension_numbers = #tpu.dot_dimension_numbers<[1], [0], [0], [1], [0, 0, 1, 1], [], []>} : vector<64x32xf32>, vector<32x8xf32>, vector<64x8xf32> -> vector<64x8xf32>
    %c0_55 = arith.constant 0 : index
    %c0_56 = arith.constant 0 : index
    %181 = vector.load %arg6[%c0_55, %c0_56] : memref<1x8xf32, #tpu.memory_space<vmem>>, vector<1x8xf32>
    %182 = vector.broadcast %181 : vector<1x8xf32> to vector<64x8xf32>
    %183 = arith.addf %180, %182 : vector<64x8xf32>
    %184 = vector.extract_strided_slice %183 {offsets = [0, 0], sizes = [8, 8], strides = [1, 1]} : vector<64x8xf32> to vector<8x8xf32>
    %c0_57 = arith.constant 0 : index
    %c0_58 = arith.constant 0 : index
    %c0_59 = arith.constant 0 : index
    %185 = vector.load %arg9[%c0_57, %c0_58, %c0_59] : memref<8x8x8xf32, #tpu.memory_space<vmem>>, vector<8x1x8xf32>
    %186 = vector.shape_cast %185 : vector<8x1x8xf32> to vector<8x8xf32>
    %187 = vector.shape_cast %184 : vector<8x8xf32> to vector<8x1x8xf32>
    tpu.vector_store %arg9[%c0_57, %c0_58, %c0_59], %187 {strides = array<i32>} : memref<8x8x8xf32, #tpu.memory_space<vmem>>, vector<8x1x8xf32>,
    %188 = vector.extract_strided_slice %183 {offsets = [8, 0], sizes = [8, 8], strides = [1, 1]} : vector<64x8xf32> to vector<8x8xf32>
    %c0_60 = arith.constant 0 : index
    %c1_61 = arith.constant 1 : index
    %c0_62 = arith.constant 0 : index
    %189 = vector.load %arg9[%c0_60, %c1_61, %c0_62] : memref<8x8x8xf32, #tpu.memory_space<vmem>>, vector<8x1x8xf32>
    %190 = vector.shape_cast %189 : vector<8x1x8xf32> to vector<8x8xf32>
    %191 = vector.shape_cast %188 : vector<8x8xf32> to vector<8x1x8xf32>
    tpu.vector_store %arg9[%c0_60, %c1_61, %c0_62], %191 {strides = array<i32>} : memref<8x8x8xf32, #tpu.memory_space<vmem>>, vector<8x1x8xf32>,
    %192 = vector.extract_strided_slice %183 {offsets = [16, 0], sizes = [8, 8], strides = [1, 1]} : vector<64x8xf32> to vector<8x8xf32>
    %c0_63 = arith.constant 0 : index
    %c2_64 = arith.constant 2 : index
    %c0_65 = arith.constant 0 : index
    %193 = vector.load %arg9[%c0_63, %c2_64, %c0_65] : memref<8x8x8xf32, #tpu.memory_space<vmem>>, vector<8x1x8xf32>
    %194 = vector.shape_cast %193 : vector<8x1x8xf32> to vector<8x8xf32>
    %195 = vector.shape_cast %192 : vector<8x8xf32> to vector<8x1x8xf32>
    tpu.vector_store %arg9[%c0_63, %c2_64, %c0_65], %195 {strides = array<i32>} : memref<8x8x8xf32, #tpu.memory_space<vmem>>, vector<8x1x8xf32>,
    %196 = vector.extract_strided_slice %183 {offsets = [24, 0], sizes = [8, 8], strides = [1, 1]} : vector<64x8xf32> to vector<8x8xf32>
    %c0_66 = arith.constant 0 : index
    %c3_67 = arith.constant 3 : index
    %c0_68 = arith.constant 0 : index
    %197 = vector.load %arg9[%c0_66, %c3_67, %c0_68] : memref<8x8x8xf32, #tpu.memory_space<vmem>>, vector<8x1x8xf32>
    %198 = vector.shape_cast %197 : vector<8x1x8xf32> to vector<8x8xf32>
    %199 = vector.shape_cast %196 : vector<8x8xf32> to vector<8x1x8xf32>
    tpu.vector_store %arg9[%c0_66, %c3_67, %c0_68], %199 {strides = array<i32>} : memref<8x8x8xf32, #tpu.memory_space<vmem>>, vector<8x1x8xf32>,
    %200 = vector.extract_strided_slice %183 {offsets = [32, 0], sizes = [8, 8], strides = [1, 1]} : vector<64x8xf32> to vector<8x8xf32>
    %c0_69 = arith.constant 0 : index
    %c4_70 = arith.constant 4 : index
    %c0_71 = arith.constant 0 : index
    %201 = vector.load %arg9[%c0_69, %c4_70, %c0_71] : memref<8x8x8xf32, #tpu.memory_space<vmem>>, vector<8x1x8xf32>
    %202 = vector.shape_cast %201 : vector<8x1x8xf32> to vector<8x8xf32>
    %203 = vector.shape_cast %200 : vector<8x8xf32> to vector<8x1x8xf32>
    tpu.vector_store %arg9[%c0_69, %c4_70, %c0_71], %203 {strides = array<i32>} : memref<8x8x8xf32, #tpu.memory_space<vmem>>, vector<8x1x8xf32>,
    %204 = vector.extract_strided_slice %183 {offsets = [40, 0], sizes = [8, 8], strides = [1, 1]} : vector<64x8xf32> to vector<8x8xf32>
    %c0_72 = arith.constant 0 : index
    %c5_73 = arith.constant 5 : index
    %c0_74 = arith.constant 0 : index
    %205 = vector.load %arg9[%c0_72, %c5_73, %c0_74] : memref<8x8x8xf32, #tpu.memory_space<vmem>>, vector<8x1x8xf32>
    %206 = vector.shape_cast %205 : vector<8x1x8xf32> to vector<8x8xf32>
    %207 = vector.shape_cast %204 : vector<8x8xf32> to vector<8x1x8xf32>
    tpu.vector_store %arg9[%c0_72, %c5_73, %c0_74], %207 {strides = array<i32>} : memref<8x8x8xf32, #tpu.memory_space<vmem>>, vector<8x1x8xf32>,
    %208 = vector.extract_strided_slice %183 {offsets = [48, 0], sizes = [8, 8], strides = [1, 1]} : vector<64x8xf32> to vector<8x8xf32>
    %c0_75 = arith.constant 0 : index
    %c6_76 = arith.constant 6 : index
    %c0_77 = arith.constant 0 : index
    %209 = vector.load %arg9[%c0_75, %c6_76, %c0_77] : memref<8x8x8xf32, #tpu.memory_space<vmem>>, vector<8x1x8xf32>
    %210 = vector.shape_cast %209 : vector<8x1x8xf32> to vector<8x8xf32>
    %211 = vector.shape_cast %208 : vector<8x8xf32> to vector<8x1x8xf32>
    tpu.vector_store %arg9[%c0_75, %c6_76, %c0_77], %211 {strides = array<i32>} : memref<8x8x8xf32, #tpu.memory_space<vmem>>, vector<8x1x8xf32>,
    %212 = vector.extract_strided_slice %183 {offsets = [56, 0], sizes = [8, 8], strides = [1, 1]} : vector<64x8xf32> to vector<8x8xf32>
    %c0_78 = arith.constant 0 : index
    %c7_79 = arith.constant 7 : index
    %c0_80 = arith.constant 0 : index
    %213 = vector.load %arg9[%c0_78, %c7_79, %c0_80] : memref<8x8x8xf32, #tpu.memory_space<vmem>>, vector<8x1x8xf32>
    %214 = vector.shape_cast %213 : vector<8x1x8xf32> to vector<8x8xf32>
    %215 = vector.shape_cast %212 : vector<8x8xf32> to vector<8x1x8xf32>
    tpu.vector_store %arg9[%c0_78, %c7_79, %c0_80], %215 {strides = array<i32>} : memref<8x8x8xf32, #tpu.memory_space<vmem>>, vector<8x1x8xf32>,
    return
  }
  func.func @transform_0(%arg0: i32) -> (i32, i32, i32) {
    %c0_i32 = arith.constant 0 : i32
    %c0_i32_0 = arith.constant 0 : i32
    %c0_i32_1 = arith.constant 0 : i32
    %c0_i32_2 = arith.constant 0 : i32
    return %c0_i32, %c0_i32_0, %c0_i32_1 : i32, i32, i32
  }
  func.func @transform_1(%arg0: i32) -> (i32, i32) {
    %c0_i32 = arith.constant 0 : i32
    %c0_i32_0 = arith.constant 0 : i32
    %c0_i32_1 = arith.constant 0 : i32
    return %c0_i32, %c0_i32_0 : i32, i32
  }
  func.func @transform_2(%arg0: i32) -> (i32, i32) {
    %c0_i32 = arith.constant 0 : i32
    %c0_i32_0 = arith.constant 0 : i32
    %c0_i32_1 = arith.constant 0 : i32
    return %c0_i32, %c0_i32_0 : i32, i32
  }
  func.func @transform_3(%arg0: i32) -> (i32, i32) {
    %c0_i32 = arith.constant 0 : i32
    %c0_i32_0 = arith.constant 0 : i32
    %c0_i32_1 = arith.constant 0 : i32
    return %c0_i32, %c0_i32_0 : i32, i32
  }
  func.func @transform_4(%arg0: i32) -> (i32, i32) {
    %c0_i32 = arith.constant 0 : i32
    %c0_i32_0 = arith.constant 0 : i32
    %c0_i32_1 = arith.constant 0 : i32
    return %c0_i32, %c0_i32_0 : i32, i32
  }
  func.func @transform_5(%arg0: i32) -> (i32, i32) {
    %c0_i32 = arith.constant 0 : i32
    %c0_i32_0 = arith.constant 0 : i32
    %c0_i32_1 = arith.constant 0 : i32
    return %c0_i32, %c0_i32_0 : i32, i32
  }
  func.func @transform_6(%arg0: i32) -> (i32, i32) {
    %c0_i32 = arith.constant 0 : i32
    %c0_i32_0 = arith.constant 0 : i32
    %c0_i32_1 = arith.constant 0 : i32
    return %c0_i32, %c0_i32_0 : i32, i32
  }
  func.func @transform_7(%arg0: i32) -> (i32, i32) {
    %c0_i32 = arith.constant 0 : i32
    %c0_i32_0 = arith.constant 0 : i32
    %c0_i32_1 = arith.constant 0 : i32
    return %c0_i32, %c0_i32_0 : i32, i32
  }
  func.func @transform_8(%arg0: i32) -> (i32, i32, i32) {
    %c0_i32 = arith.constant 0 : i32
    %c0_i32_0 = arith.constant 0 : i32
    %c0_i32_1 = arith.constant 0 : i32
    %c0_i32_2 = arith.constant 0 : i32
    return %c0_i32, %c0_i32_0, %c0_i32_1 : i32, i32, i32
  }
}

</mosaic_0001>

<llo_original>
// kernel: lstm_forward.1
$region0: #{lstm_forward.1}
  #allocation0 [shape = 'u32[]', space=smem, size = 0x4, offset = 0x4, fixed_abs, tag = 'smem constant byte address 0x4 - core index']
  #allocation1 [shape = 'u32[144,128]{1,0:T(1,128)}', space=vmem, size = 0x12000, scoped, tag = 'internal scratch']
  %s0 = inlined_call_operand.hbm [shape: f32[8,8,16], index: 0, kind: input, shape index: {}]
  %s1 = inlined_call_operand.hbm [shape: f32[16,128], index: 1, kind: input, shape index: {}]
  %s2 = inlined_call_operand.vmem [shape: f32[32,128], index: 2, kind: input, shape index: {}]
  %s3 = inlined_call_operand.vmem [shape: f32[1,128], index: 3, kind: input, shape index: {}]
  %s4 = inlined_call_operand.vmem [shape: f32[32,8], index: 4, kind: input, shape index: {}]
  %s5 = inlined_call_operand.vmem [shape: f32[1,8], index: 5, kind: input, shape index: {}]
  %s6 = inlined_call_operand.vmem [shape: f32[8,32], index: 6, kind: input, shape index: {}]
  %s7 = inlined_call_operand.vmem [shape: f32[8,32], index: 7, kind: input, shape index: {}]
  %s8 = inlined_call_operand.hbm [shape: f32[8,8,8], index: 8, kind: output, shape index: {}]
  %s9 = sld [smem:[#allocation0]]
  $region50: #{lstm_forward.1} parent=0
    _
  %s11 = ssub.s32 1, %s9
  %s12 = scalar_select 0, %s11, %s9
  $region1: #{lstm_forward.1} parent=0
    #allocation2 [shape = 'u8[32768]{0}', space=vmem, size = 0x8000, scoped, tag = 'input window, operand 0, single buffered']
    #allocation3 [shape = 's32[1]{0}', space=sflag, size = 0x4, scoped, tag = 'scoped memory for lstm_forward.1']
    #allocation4 [shape = 's32[1]{0}', space=sflag, size = 0x4, scoped, tag = 'scoped memory for lstm_forward.1']
    #allocation5 [shape = 'u8[8192]{0}', space=vmem, size = 0x2000, scoped, tag = 'input window, operand 1, single buffered']
    #allocation6 [shape = 's32[1]{0}', space=sflag, size = 0x4, scoped, tag = 'scoped memory for lstm_forward.1']
    #allocation7 [shape = 'u8[32768]{0}', space=vmem, size = 0x8000, scoped, tag = 'output window, operand 0, single buffered']
    %13 = vsyncpa [#allocation3], 0
    %14 = vsyncpa [#allocation6], 0
    %15 = vsyncpa [#allocation4], 0
    // Predicated region
    $region2: #{lstm_forward.1} parent=1 // pred_check
      _
    $region3: #{lstm_forward.1} parent=1 // pred_check_branch
      %17 = sbr.rel (0) target = $region5
    $region4: #{lstm_forward.1} parent=1 // pred_region
      %s19 = ssub.s32 1024, 1024
      %20 = vsyncadd [#allocation3], %s19
      %s21 = sshll.u32 [#allocation2], 4
      %s22 = int_to_ptr.vmem [resolvable:$true] %s21
      %27 = dma.hbm_to_vmem [thread:$0]  %s0, 1024, %s22, [#allocation3], 128, 128, 8
    $region5: #{lstm_forward.1} parent=1 // pred_fallthru
      _
    // Predicated region
    $region6: #{lstm_forward.1} parent=1 // pred_check
      _
    $region7: #{lstm_forward.1} parent=1 // pred_check_branch
      %29 = sbr.rel (0) target = $region9
    $region8: #{lstm_forward.1} parent=1 // pred_region
      %s31 = ssub.s32 256, 256
      %32 = vsyncadd [#allocation6], %s31
      %s33 = sshll.u32 [#allocation5], 4
      %s34 = int_to_ptr.vmem [resolvable:$true] %s33
      %39 = dma.hbm_to_vmem [thread:$0]  %s1, 256, %s34, [#allocation6], 128, 128, 8
    $region9: #{lstm_forward.1} parent=1 // pred_fallthru
      _
    // Predicated region
    $region10: #{lstm_forward.1} parent=1 // pred_check
      _
    $region11: #{lstm_forward.1} parent=1 // pred_check_branch
      %41 = sbr.rel (0) target = $region13
    $region12: #{lstm_forward.1} parent=1 // pred_region
      _
    $region13: #{lstm_forward.1} parent=1 // pred_fallthru
      _
    // Predicated region
    $region14: #{lstm_forward.1} parent=1 // pred_check
      _
    $region15: #{lstm_forward.1} parent=1 // pred_check_branch
      %43 = sbr.rel (0) target = $region17
    $region16: #{lstm_forward.1} parent=1 // pred_region
      _
    $region17: #{lstm_forward.1} parent=1 // pred_fallthru
      _
    // Predicated region
    $region18: #{lstm_forward.1} parent=1 // pred_check
      _
    $region19: #{lstm_forward.1} parent=1 // pred_check_branch
      %45 = sbr.rel (0) target = $region21
    $region20: #{lstm_forward.1} parent=1 // pred_region
      _
    $region21: #{lstm_forward.1} parent=1 // pred_fallthru
      _
    // Predicated region
    $region22: #{lstm_forward.1} parent=1 // pred_check
      _
    $region23: #{lstm_forward.1} parent=1 // pred_check_branch
      %47 = sbr.rel (0) target = $region25
    $region24: #{lstm_forward.1} parent=1 // pred_region
      _
    $region25: #{lstm_forward.1} parent=1 // pred_fallthru
      _
    // Predicated region
    $region26: #{lstm_forward.1} parent=1 // pred_check
      _
    $region27: #{lstm_forward.1} parent=1 // pred_check_branch
      %49 = sbr.rel (0) target = $region29
    $region28: #{lstm_forward.1} parent=1 // pred_region
      _
    $region29: #{lstm_forward.1} parent=1 // pred_fallthru
      _
    // Predicated region
    $region30: #{lstm_forward.1} parent=1 // pred_check
      _
    $region31: #{lstm_forward.1} parent=1 // pred_check_branch
      %51 = sbr.rel (0) target = $region33
    $region32: #{lstm_forward.1} parent=1 // pred_region
      _
    $region33: #{lstm_forward.1} parent=1 // pred_fallthru
      _
    // Predicated region
    $region34: #{lstm_forward.1} parent=1 // pred_check
      _
    $region35: #{lstm_forward.1} parent=1 // pred_check_branch
      %53 = sbr.rel (0) target = $region37
    $region36: #{lstm_forward.1} parent=1 // pred_region
      %54 = dma.done [#allocation3], 1024
    $region37: #{lstm_forward.1} parent=1 // pred_fallthru
      _
    // Predicated region
    $region38: #{lstm_forward.1} parent=1 // pred_check
      _
    $region39: #{lstm_forward.1} parent=1 // pred_check_branch
      %56 = sbr.rel (0) target = $region41
    $region40: #{lstm_forward.1} parent=1 // pred_region
      %57 = dma.done [#allocation6], 256
    $region41: #{lstm_forward.1} parent=1 // pred_fallthru
      _
    %v58 = vld [vmem:[%s2] sm:$0xff]
    %v59 = vld [vmem:[%s2 + $0x8] sm:$0xff]
    %v60 = vld [vmem:[%s2 + $0x10] sm:$0xff]
    %v61 = vld [vmem:[%s2 + $0x18] sm:$0xff]
    %v62 = vld [vmem:[#allocation2] sm:$0x1]
    %v63 = vld [vmem:[#allocation2 + $0x8] sm:$0x1]
    %v64 = vld [vmem:[#allocation2 + $0x10] sm:$0x1]
    %v65 = vld [vmem:[#allocation2 + $0x18] sm:$0x1]
    %v66 = vld [vmem:[#allocation2 + $0x20] sm:$0x1]
    %v67 = vld [vmem:[#allocation2 + $0x28] sm:$0x1]
    %v68 = vld [vmem:[#allocation2 + $0x30] sm:$0x1]
    %v69 = vld [vmem:[#allocation2 + $0x38] sm:$0x1]
    %v70 = vld [vmem:[#allocation2 + $0x1] sm:$0x1]
    %v71 = vld [vmem:[#allocation2 + $0x9] sm:$0x1]
    %v72 = vld [vmem:[#allocation2 + $0x11] sm:$0x1]
    %v73 = vld [vmem:[#allocation2 + $0x19] sm:$0x1]
    %v74 = vld [vmem:[#allocation2 + $0x21] sm:$0x1]
    %v75 = vld [vmem:[#allocation2 + $0x29] sm:$0x1]
    %v76 = vld [vmem:[#allocation2 + $0x31] sm:$0x1]
    %v77 = vld [vmem:[#allocation2 + $0x39] sm:$0x1]
    %v78 = vld [vmem:[#allocation2 + $0x2] sm:$0x1]
    %v79 = vld [vmem:[#allocation2 + $0xa] sm:$0x1]
    %v80 = vld [vmem:[#allocation2 + $0x12] sm:$0x1]
    %v81 = vld [vmem:[#allocation2 + $0x1a] sm:$0x1]
    %v82 = vld [vmem:[#allocation2 + $0x22] sm:$0x1]
    %v83 = vld [vmem:[#allocation2 + $0x2a] sm:$0x1]
    %v84 = vld [vmem:[#allocation2 + $0x32] sm:$0x1]
    %v85 = vld [vmem:[#allocation2 + $0x3a] sm:$0x1]
    %v86 = vld [vmem:[#allocation2 + $0x3] sm:$0x1]
    %v87 = vld [vmem:[#allocation2 + $0xb] sm:$0x1]
    %v88 = vld [vmem:[#allocation2 + $0x13] sm:$0x1]
    %v89 = vld [vmem:[#allocation2 + $0x1b] sm:$0x1]
    %v90 = vld [vmem:[#allocation2 + $0x23] sm:$0x1]
    %v91 = vld [vmem:[#allocation2 + $0x2b] sm:$0x1]
    %v92 = vld [vmem:[#allocation2 + $0x33] sm:$0x1]
    %v93 = vld [vmem:[#allocation2 + $0x3b] sm:$0x1]
    %v94 = vld [vmem:[#allocation2 + $0x4] sm:$0x1]
    %v95 = vld [vmem:[#allocation2 + $0xc] sm:$0x1]
    %v96 = vld [vmem:[#allocation2 + $0x14] sm:$0x1]
    %v97 = vld [vmem:[#allocation2 + $0x1c] sm:$0x1]
    %v98 = vld [vmem:[#allocation2 + $0x24] sm:$0x1]
    %v99 = vld [vmem:[#allocation2 + $0x2c] sm:$0x1]
    %v100 = vld [vmem:[#allocation2 + $0x34] sm:$0x1]
    %v101 = vld [vmem:[#allocation2 + $0x3c] sm:$0x1]
    %v102 = vld [vmem:[#allocation2 + $0x5] sm:$0x1]
    %v103 = vld [vmem:[#allocation2 + $0xd] sm:$0x1]
    %v104 = vld [vmem:[#allocation2 + $0x15] sm:$0x1]
    %v105 = vld [vmem:[#allocation2 + $0x1d] sm:$0x1]
    %v106 = vld [vmem:[#allocation2 + $0x25] sm:$0x1]
    %v107 = vld [vmem:[#allocation2 + $0x2d] sm:$0x1]
    %v108 = vld [vmem:[#allocation2 + $0x35] sm:$0x1]
    %v109 = vld [vmem:[#allocation2 + $0x3d] sm:$0x1]
    %v110 = vld [vmem:[#allocation2 + $0x6] sm:$0x1]
    %v111 = vld [vmem:[#allocation2 + $0xe] sm:$0x1]
    %v112 = vld [vmem:[#allocation2 + $0x16] sm:$0x1]
    %v113 = vld [vmem:[#allocation2 + $0x1e] sm:$0x1]
    %v114 = vld [vmem:[#allocation2 + $0x26] sm:$0x1]
    %v115 = vld [vmem:[#allocation2 + $0x2e] sm:$0x1]
    %v116 = vld [vmem:[#allocation2 + $0x36] sm:$0x1]
    %v117 = vld [vmem:[#allocation2 + $0x3e] sm:$0x1]
    %v118 = vld [vmem:[#allocation2 + $0x7] sm:$0x1]
    %v119 = vld [vmem:[#allocation2 + $0xf] sm:$0x1]
    %v120 = vld [vmem:[#allocation2 + $0x17] sm:$0x1]
    %v121 = vld [vmem:[#allocation2 + $0x1f] sm:$0x1]
    %v122 = vld [vmem:[#allocation2 + $0x27] sm:$0x1]
    %v123 = vld [vmem:[#allocation2 + $0x2f] sm:$0x1]
    %v124 = vld [vmem:[#allocation2 + $0x37] sm:$0x1]
    %v125 = vld [vmem:[#allocation2 + $0x3f] sm:$0x1]
    %v134 = vrot.slane %v63, 7
    %vm135 = vcmask 1041409
    %v136 = vsel %vm135, %v134, %v62
    %v137 = vrot.slane %v64, 6
    %vm138 = vcmask 1042434
    %v139 = vsel %vm138, %v137, %v136
    %v140 = vrot.slane %v65, 5
    %vm141 = vcmask 1043459
    %v142 = vsel %vm141, %v140, %v139
    %v143 = vrot.slane %v66, 4
    %vm144 = vcmask 1044484
    %v145 = vsel %vm144, %v143, %v142
    %v146 = vrot.slane %v67, 3
    %vm147 = vcmask 1045509
    %v148 = vsel %vm147, %v146, %v145
    %v149 = vrot.slane %v68, 2
    %vm150 = vcmask 1046534
    %v151 = vsel %vm150, %v149, %v148
    %v152 = vrot.slane %v69, 1
    %vm153 = vcmask 1047559
    %v154 = vsel %vm153, %v152, %v151
    %v163 = vrot.slane %v71, 7
    %v164 = vsel %vm135, %v163, %v70
    %v165 = vrot.slane %v72, 6
    %v166 = vsel %vm138, %v165, %v164
    %v167 = vrot.slane %v73, 5
    %v168 = vsel %vm141, %v167, %v166
    %v169 = vrot.slane %v74, 4
    %v170 = vsel %vm144, %v169, %v168
    %v171 = vrot.slane %v75, 3
    %v172 = vsel %vm147, %v171, %v170
    %v173 = vrot.slane %v76, 2
    %v174 = vsel %vm150, %v173, %v172
    %v175 = vrot.slane %v77, 1
    %v176 = vsel %vm153, %v175, %v174
    %v185 = vrot.slane %v79, 7
    %v186 = vsel %vm135, %v185, %v78
    %v187 = vrot.slane %v80, 6
    %v188 = vsel %vm138, %v187, %v186
    %v189 = vrot.slane %v81, 5
    %v190 = vsel %vm141, %v189, %v188
    %v191 = vrot.slane %v82, 4
    %v192 = vsel %vm144, %v191, %v190
    %v193 = vrot.slane %v83, 3
    %v194 = vsel %vm147, %v193, %v192
    %v195 = vrot.slane %v84, 2
    %v196 = vsel %vm150, %v195, %v194
    %v197 = vrot.slane %v85, 1
    %v198 = vsel %vm153, %v197, %v196
    %v207 = vrot.slane %v87, 7
    %v208 = vsel %vm135, %v207, %v86
    %v209 = vrot.slane %v88, 6
    %v210 = vsel %vm138, %v209, %v208
    %v211 = vrot.slane %v89, 5
    %v212 = vsel %vm141, %v211, %v210
    %v213 = vrot.slane %v90, 4
    %v214 = vsel %vm144, %v213, %v212
    %v215 = vrot.slane %v91, 3
    %v216 = vsel %vm147, %v215, %v214
    %v217 = vrot.slane %v92, 2
    %v218 = vsel %vm150, %v217, %v216
    %v219 = vrot.slane %v93, 1
    %v220 = vsel %vm153, %v219, %v218
    %v229 = vrot.slane %v95, 7
    %v230 = vsel %vm135, %v229, %v94
    %v231 = vrot.slane %v96, 6
    %v232 = vsel %vm138, %v231, %v230
    %v233 = vrot.slane %v97, 5
    %v234 = vsel %vm141, %v233, %v232
    %v235 = vrot.slane %v98, 4
    %v236 = vsel %vm144, %v235, %v234
    %v237 = vrot.slane %v99, 3
    %v238 = vsel %vm147, %v237, %v236
    %v239 = vrot.slane %v100, 2
    %v240 = vsel %vm150, %v239, %v238
    %v241 = vrot.slane %v101, 1
    %v242 = vsel %vm153, %v241, %v240
    %v251 = vrot.slane %v103, 7
    %v252 = vsel %vm135, %v251, %v102
    %v253 = vrot.slane %v104, 6
    %v254 = vsel %vm138, %v253, %v252
    %v255 = vrot.slane %v105, 5
    %v256 = vsel %vm141, %v255, %v254
    %v257 = vrot.slane %v106, 4
    %v258 = vsel %vm144, %v257, %v256
    %v259 = vrot.slane %v107, 3
    %v260 = vsel %vm147, %v259, %v258
    %v261 = vrot.slane %v108, 2
    %v262 = vsel %vm150, %v261, %v260
    %v263 = vrot.slane %v109, 1
    %v264 = vsel %vm153, %v263, %v262
    %v273 = vrot.slane %v111, 7
    %v274 = vsel %vm135, %v273, %v110
    %v275 = vrot.slane %v112, 6
    %v276 = vsel %vm138, %v275, %v274
    %v277 = vrot.slane %v113, 5
    %v278 = vsel %vm141, %v277, %v276
    %v279 = vrot.slane %v114, 4
    %v280 = vsel %vm144, %v279, %v278
    %v281 = vrot.slane %v115, 3
    %v282 = vsel %vm147, %v281, %v280
    %v283 = vrot.slane %v116, 2
    %v284 = vsel %vm150, %v283, %v282
    %v285 = vrot.slane %v117, 1
    %v286 = vsel %vm153, %v285, %v284
    %v295 = vrot.slane %v119, 7
    %v296 = vsel %vm135, %v295, %v118
    %v297 = vrot.slane %v120, 6
    %v298 = vsel %vm138, %v297, %v296
    %v299 = vrot.slane %v121, 5
    %v300 = vsel %vm141, %v299, %v298
    %v301 = vrot.slane %v122, 4
    %v302 = vsel %vm144, %v301, %v300
    %v303 = vrot.slane %v123, 3
    %v304 = vsel %vm147, %v303, %v302
    %v305 = vrot.slane %v124, 2
    %v306 = vsel %vm150, %v305, %v304
    %v307 = vrot.slane %v125, 1
    %v308 = vsel %vm153, %v307, %v306
    %v309 = vld [vmem:[#allocation5] sm:$0xff]
    %v310 = vld [vmem:[#allocation5 + $0x8] sm:$0xff]
    %v311 = vld [vmem:[%s3] sm:$0x1]
    %v313 = vlaneseq
    %v314 = vshrl.u32 %v313, 7
    %v315 = vsub.s32 0, %v314
    %v316 = vrot.slane %v311, %v315
    %vm318 = vcmask 130048
    %v319 = vsel %vm318, %v154, 0
    %v321 = vsel %vm318, %v176, 0
    %v323 = vsel %vm318, %v198, 0
    %v325 = vsel %vm318, %v220, 0
    %v327 = vsel %vm318, %v242, 0
    %v329 = vsel %vm318, %v264, 0
    %v331 = vsel %vm318, %v286, 0
    %v333 = vsel %vm318, %v308, 0
    %335 = vmatprep.subr.mxu0 0.0
    %336 = vmatpush1.msra.mxu0 %v309
    %337 = vmatprep.subr.mxu0 0.0
    %338 = vmatpush1.msra.mxu0 %v310
    %339 = vmatprep.subr.mxu0 0.0
    %340 = vmatpush1.msra.mxu0 0.0
    %341 = vmatprep.subr.mxu0 0.0
    %342 = vmatpush1.msra.mxu0 0.0
    %343 = vmatprep.subr.mxu0 0.0
    %344 = vmatpush1.msra.mxu0 0.0
    %345 = vmatprep.subr.mxu0 0.0
    %346 = vmatpush1.msra.mxu0 0.0
    %347 = vmatprep.subr.mxu0 0.0
    %348 = vmatpush1.msra.mxu0 0.0
    %349 = vmatprep.subr.mxu0 0.0
    %350 = vmatpush1.msra.mxu0 0.0
    %351 = vmatprep.subr.mxu0 0.0
    %352 = vmatpush1.msra.mxu0 0.0
    %353 = vmatprep.subr.mxu0 0.0
    %354 = vmatpush1.msra.mxu0 0.0
    %355 = vmatprep.subr.mxu0 0.0
    %356 = vmatpush1.msra.mxu0 0.0
    %357 = vmatprep.subr.mxu0 0.0
    %358 = vmatpush1.msra.mxu0 0.0
    %359 = vmatprep.subr.mxu0 0.0
    %360 = vmatpush1.msra.mxu0 0.0
    %361 = vmatprep.subr.mxu0 0.0
    %362 = vmatpush1.msra.mxu0 0.0
    %363 = vmatprep.subr.mxu0 0.0
    %364 = vmatpush1.msra.mxu0 0.0
    %365 = vmatprep.subr.mxu0 0.0
    %366 = vmatpush1.msra.mxu0 0.0
    %367 = vmatprep.subr.mxu0 0.0
    %368 = vmatpush1.msra.mxu0 0.0
    %369 = vmatprep.subr.mxu0 0.0
    %370 = vmatpush1.msra.mxu0 0.0
    %371 = vmatprep.subr.mxu0 0.0
    %372 = vmatpush1.msra.mxu0 0.0
    %373 = vmatprep.subr.mxu0 0.0
    %374 = vmatpush1.msra.mxu0 0.0
    %375 = vmatprep.subr.mxu0 0.0
    %376 = vmatpush1.msra.mxu0 0.0
    %377 = vmatprep.subr.mxu0 0.0
    %378 = vmatpush1.msra.mxu0 0.0
    %379 = vmatprep.subr.mxu0 0.0
    %380 = vmatpush1.msra.mxu0 0.0
    %381 = vmatprep.subr.mxu0 0.0
    %382 = vmatpush1.msra.mxu0 0.0
    %383 = vmatprep.subr.mxu0 0.0
    %384 = vmatpush1.msra.mxu0 0.0
    %385 = vmatprep.subr.mxu0 0.0
    %386 = vmatpush1.msra.mxu0 0.0
    %387 = vmatprep.subr.mxu0 0.0
    %388 = vmatpush1.msra.mxu0 0.0
    %389 = vmatprep.subr.mxu0 0.0
    %390 = vmatpush1.msra.mxu0 0.0
    %391 = vmatprep.subr.mxu0 0.0
    %392 = vmatpush1.msra.mxu0 0.0
    %393 = vmatprep.subr.mxu0 0.0
    %394 = vmatpush1.msra.mxu0 0.0
    %395 = vmatprep.subr.mxu0 0.0
    %396 = vmatpush1.msra.mxu0 0.0
    %397 = vmatprep.subr.mxu0 0.0
    %398 = vmatpush1.msra.mxu0 0.0
    %399 = vmatprep.mubr.f32.mxu0 0.0
    %400 = vmatmul.mubr.f32.gmra.mrb[0].mxu0 %v319
    %v401 = vpop.f32.mrb[0].mxu0
    %v402 = vadd.f32 %v316, %v401
    %v403 = vpop.f32.mrb[0].mxu0
    %404 = vmatprep.mubr.f32.mxu0 0.0
    %405 = vmatmul.mubr.f32.gmra.mrb[0].mxu0 %v321
    %v406 = vpop.f32.mrb[0].mxu0
    %v407 = vadd.f32 %v316, %v406
    %v408 = vpop.f32.mrb[0].mxu0
    %409 = vmatprep.mubr.f32.mxu0 0.0
    %410 = vmatmul.mubr.f32.gmra.mrb[0].mxu0 %v323
    %v411 = vpop.f32.mrb[0].mxu0
    %v412 = vadd.f32 %v316, %v411
    %v413 = vpop.f32.mrb[0].mxu0
    %414 = vmatprep.mubr.f32.mxu0 0.0
    %415 = vmatmul.mubr.f32.gmra.mrb[0].mxu0 %v325
    %v416 = vpop.f32.mrb[0].mxu0
    %v417 = vadd.f32 %v316, %v416
    %v418 = vpop.f32.mrb[0].mxu0
    %419 = vmatprep.mubr.f32.mxu0 0.0
    %420 = vmatmul.mubr.f32.gmra.mrb[0].mxu0 %v327
    %v421 = vpop.f32.mrb[0].mxu0
    %v422 = vadd.f32 %v316, %v421
    %v423 = vpop.f32.mrb[0].mxu0
    %424 = vmatprep.mubr.f32.mxu0 0.0
    %425 = vmatmul.mubr.f32.gmra.mrb[0].mxu0 %v329
    %v426 = vpop.f32.mrb[0].mxu0
    %v427 = vadd.f32 %v316, %v426
    %v428 = vpop.f32.mrb[0].mxu0
    %429 = vmatprep.mubr.f32.mxu0 0.0
    %430 = vmatmul.mubr.f32.gmra.mrb[0].mxu0 %v331
    %v431 = vpop.f32.mrb[0].mxu0
    %v432 = vadd.f32 %v316, %v431
    %v433 = vpop.f32.mrb[0].mxu0
    %434 = vmatprep.mubr.f32.mxu0 0.0
    %435 = vmatmul.mubr.f32.gmra.mrb[0].mxu0 %v333
    %v436 = vpop.f32.mrb[0].mxu0
    %v437 = vadd.f32 %v316, %v436
    %v438 = vpop.f32.mrb[0].mxu0
    %439 = vdwg.mxu0
    %v440 = vlaneseq
    %v441 = vand.u32 %v440, 127
    %vm442 = vcmp.ge.s32.totalorder %v441, 64
    %vm443 = vcmp.lt.s32.totalorder %v441, 96
    %vm444 = vmand %vm442, %vm443
    %v445 = vsel %vm444, 1.0, 0.5
    %v446 = vld [vmem:[%s6] sm:$0xff]
    %v447 = vld [vmem:[%s7] sm:$0xff]
    %vm448 = vcmask 261120
    %v450 = vsel %vm448, %v446, 0
    %452 = vmatprep.subr.mxu0 0.0
    %453 = vmatpush1.msra.mxu0 %v58
    %454 = vmatprep.subr.mxu0 0.0
    %455 = vmatpush1.msra.mxu0 %v59
    %456 = vmatprep.subr.mxu0 0.0
    %457 = vmatpush1.msra.mxu0 %v60
    %458 = vmatprep.subr.mxu0 0.0
    %459 = vmatpush1.msra.mxu0 %v61
    %460 = vmatprep.subr.mxu0 0.0
    %461 = vmatpush1.msra.mxu0 0.0
    %462 = vmatprep.subr.mxu0 0.0
    %463 = vmatpush1.msra.mxu0 0.0
    %464 = vmatprep.subr.mxu0 0.0
    %465 = vmatpush1.msra.mxu0 0.0
    %466 = vmatprep.subr.mxu0 0.0
    %467 = vmatpush1.msra.mxu0 0.0
    %468 = vmatprep.subr.mxu0 0.0
    %469 = vmatpush1.msra.mxu0 0.0
    %470 = vmatprep.subr.mxu0 0.0
    %471 = vmatpush1.msra.mxu0 0.0
    %472 = vmatprep.subr.mxu0 0.0
    %473 = vmatpush1.msra.mxu0 0.0
    %474 = vmatprep.subr.mxu0 0.0
    %475 = vmatpush1.msra.mxu0 0.0
    %476 = vmatprep.subr.mxu0 0.0
    %477 = vmatpush1.msra.mxu0 0.0
    %478 = vmatprep.subr.mxu0 0.0
    %479 = vmatpush1.msra.mxu0 0.0
    %480 = vmatprep.subr.mxu0 0.0
    %481 = vmatpush1.msra.mxu0 0.0
    %482 = vmatprep.subr.mxu0 0.0
    %483 = vmatpush1.msra.mxu0 0.0
    %484 = vmatprep.subr.mxu0 0.0
    %485 = vmatpush1.msra.mxu0 0.0
    %486 = vmatprep.subr.mxu0 0.0
    %487 = vmatpush1.msra.mxu0 0.0
    %488 = vmatprep.subr.mxu0 0.0
    %489 = vmatpush1.msra.mxu0 0.0
    %490 = vmatprep.subr.mxu0 0.0
    %491 = vmatpush1.msra.mxu0 0.0
    %492 = vmatprep.subr.mxu0 0.0
    %493 = vmatpush1.msra.mxu0 0.0
    %494 = vmatprep.subr.mxu0 0.0
    %495 = vmatpush1.msra.mxu0 0.0
    %496 = vmatprep.subr.mxu0 0.0
    %497 = vmatpush1.msra.mxu0 0.0
    %498 = vmatprep.subr.mxu0 0.0
    %499 = vmatpush1.msra.mxu0 0.0
    %500 = vmatprep.subr.mxu0 0.0
    %501 = vmatpush1.msra.mxu0 0.0
    %502 = vmatprep.subr.mxu0 0.0
    %503 = vmatpush1.msra.mxu0 0.0
    %504 = vmatprep.subr.mxu0 0.0
    %505 = vmatpush1.msra.mxu0 0.0
    %506 = vmatprep.subr.mxu0 0.0
    %507 = vmatpush1.msra.mxu0 0.0
    %508 = vmatprep.subr.mxu0 0.0
    %509 = vmatpush1.msra.mxu0 0.0
    %510 = vmatprep.subr.mxu0 0.0
    %511 = vmatpush1.msra.mxu0 0.0
    %512 = vmatprep.subr.mxu0 0.0
    %513 = vmatpush1.msra.mxu0 0.0
    %514 = vmatprep.subr.mxu0 0.0
    %515 = vmatpush1.msra.mxu0 0.0
    %516 = vmatprep.mubr.f32.mxu0 0.0
    %517 = vmatmul.mubr.f32.gmra.mrb[0].mxu0 %v450
    %v518 = vpop.f32.mrb[0].mxu0
    %v519 = vadd.f32 0.0, %v518
    %v520 = vpop.f32.mrb[0].mxu0
    %521 = vdwg.mxu0
    %v522 = vadd.f32 %v402, %v519
    %v523 = vmul.f32 %v522, %v445
    %v524 = vtanh.pop %v523
    %v525 = vmul.f32 %v524, 0.5
    %v526 = vadd.f32 %v525, 0.5
    %528 = vrot.lane.b32.xlu0 %v447, 32
    %v529 = vpop.permute.xlu0 %528
    %v531 = vmul.f32 %v526, %v529
    %533 = vrot.lane.b32.xlu0 %v524, 64
    %v534 = vpop.permute.xlu0 %533
    %v536 = vmul.f32 %v526, %v534
    %538 = vrot.lane.b32.xlu0 %v536, 32
    %v539 = vpop.permute.xlu0 %538
    %v541 = vadd.f32 %v531, %v539
    %v542 = vtanh.pop %v541
    %544 = vrot.lane.b32.xlu0 %v542, 64
    %v545 = vpop.permute.xlu0 %544
    %v547 = vmul.f32 %v526, %v545
    %549 = vrot.lane.b32.xlu0 %v547, 32
    %v550 = vpop.permute.xlu0 %549
    %v551 = vsel %vm448, %v550, 0
    %553 = vmatprep.subr.mxu0 0.0
    %554 = vmatpush1.msra.mxu0 %v58
    %555 = vmatprep.subr.mxu0 0.0
    %556 = vmatpush1.msra.mxu0 %v59
    %557 = vmatprep.subr.mxu0 0.0
    %558 = vmatpush1.msra.mxu0 %v60
    %559 = vmatprep.subr.mxu0 0.0
    %560 = vmatpush1.msra.mxu0 %v61
    %561 = vmatprep.subr.mxu0 0.0
    %562 = vmatpush1.msra.mxu0 0.0
    %563 = vmatprep.subr.mxu0 0.0
    %564 = vmatpush1.msra.mxu0 0.0
    %565 = vmatprep.subr.mxu0 0.0
    %566 = vmatpush1.msra.mxu0 0.0
    %567 = vmatprep.subr.mxu0 0.0
    %568 = vmatpush1.msra.mxu0 0.0
    %569 = vmatprep.subr.mxu0 0.0
    %570 = vmatpush1.msra.mxu0 0.0
    %571 = vmatprep.subr.mxu0 0.0
    %572 = vmatpush1.msra.mxu0 0.0
    %573 = vmatprep.subr.mxu0 0.0
    %574 = vmatpush1.msra.mxu0 0.0
    %575 = vmatprep.subr.mxu0 0.0
    %576 = vmatpush1.msra.mxu0 0.0
    %577 = vmatprep.subr.mxu0 0.0
    %578 = vmatpush1.msra.mxu0 0.0
    %579 = vmatprep.subr.mxu0 0.0
    %580 = vmatpush1.msra.mxu0 0.0
    %581 = vmatprep.subr.mxu0 0.0
    %582 = vmatpush1.msra.mxu0 0.0
    %583 = vmatprep.subr.mxu0 0.0
    %584 = vmatpush1.msra.mxu0 0.0
    %585 = vmatprep.subr.mxu0 0.0
    %586 = vmatpush1.msra.mxu0 0.0
    %587 = vmatprep.subr.mxu0 0.0
    %588 = vmatpush1.msra.mxu0 0.0
    %589 = vmatprep.subr.mxu0 0.0
    %590 = vmatpush1.msra.mxu0 0.0
    %591 = vmatprep.subr.mxu0 0.0
    %592 = vmatpush1.msra.mxu0 0.0
    %593 = vmatprep.subr.mxu0 0.0
    %594 = vmatpush1.msra.mxu0 0.0
    %595 = vmatprep.subr.mxu0 0.0
    %596 = vmatpush1.msra.mxu0 0.0
    %597 = vmatprep.subr.mxu0 0.0
    %598 = vmatpush1.msra.mxu0 0.0
    %599 = vmatprep.subr.mxu0 0.0
    %600 = vmatpush1.msra.mxu0 0.0
    %601 = vmatprep.subr.mxu0 0.0
    %602 = vmatpush1.msra.mxu0 0.0
    %603 = vmatprep.subr.mxu0 0.0
    %604 = vmatpush1.msra.mxu0 0.0
    %605 = vmatprep.subr.mxu0 0.0
    %606 = vmatpush1.msra.mxu0 0.0
    %607 = vmatprep.subr.mxu0 0.0
    %608 = vmatpush1.msra.mxu0 0.0
    %609 = vmatprep.subr.mxu0 0.0
    %610 = vmatpush1.msra.mxu0 0.0
    %611 = vmatprep.subr.mxu0 0.0
    %612 = vmatpush1.msra.mxu0 0.0
    %613 = vmatprep.subr.mxu0 0.0
    %614 = vmatpush1.msra.mxu0 0.0
    %615 = vmatprep.subr.mxu0 0.0
    %616 = vmatpush1.msra.mxu0 0.0
    %617 = vmatprep.mubr.f32.mxu0 0.0
    %618 = vmatmul.mubr.f32.gmra.mrb[0].mxu0 %v551
    %v619 = vpop.f32.mrb[0].mxu0
    %v620 = vadd.f32 0.0, %v619
    %v621 = vpop.f32.mrb[0].mxu0
    %622 = vdwg.mxu0
    %v623 = vadd.f32 %v407, %v620
    %v624 = vmul.f32 %v623, %v445
    %v625 = vtanh.pop %v624
    %v626 = vmul.f32 %v625, 0.5
    %v627 = vadd.f32 %v626, 0.5
    %v628 = vmul.f32 %v627, %v541
    %630 = vrot.lane.b32.xlu0 %v625, 64
    %v631 = vpop.permute.xlu0 %630
    %v633 = vmul.f32 %v627, %v631
    %635 = vrot.lane.b32.xlu0 %v633, 32
    %v636 = vpop.permute.xlu0 %635
    %v638 = vadd.f32 %v628, %v636
    %v639 = vtanh.pop %v638
    %641 = vrot.lane.b32.xlu0 %v639, 64
    %v642 = vpop.permute.xlu0 %641
    %v644 = vmul.f32 %v627, %v642
    %646 = vrot.lane.b32.xlu0 %v644, 32
    %v647 = vpop.permute.xlu0 %646
    %v648 = vsel %vm448, %v647, 0
    %650 = vmatprep.subr.mxu0 0.0
    %651 = vmatpush1.msra.mxu0 %v58
    %652 = vmatprep.subr.mxu0 0.0
    %653 = vmatpush1.msra.mxu0 %v59
    %654 = vmatprep.subr.mxu0 0.0
    %655 = vmatpush1.msra.mxu0 %v60
    %656 = vmatprep.subr.mxu0 0.0
    %657 = vmatpush1.msra.mxu0 %v61
    %658 = vmatprep.subr.mxu0 0.0
    %659 = vmatpush1.msra.mxu0 0.0
    %660 = vmatprep.subr.mxu0 0.0
    %661 = vmatpush1.msra.mxu0 0.0
    %662 = vmatprep.subr.mxu0 0.0
    %663 = vmatpush1.msra.mxu0 0.0
    %664 = vmatprep.subr.mxu0 0.0
    %665 = vmatpush1.msra.mxu0 0.0
    %666 = vmatprep.subr.mxu0 0.0
    %667 = vmatpush1.msra.mxu0 0.0
    %668 = vmatprep.subr.mxu0 0.0
    %669 = vmatpush1.msra.mxu0 0.0
    %670 = vmatprep.subr.mxu0 0.0
    %671 = vmatpush1.msra.mxu0 0.0
    %672 = vmatprep.subr.mxu0 0.0
    %673 = vmatpush1.msra.mxu0 0.0
    %674 = vmatprep.subr.mxu0 0.0
    %675 = vmatpush1.msra.mxu0 0.0
    %676 = vmatprep.subr.mxu0 0.0
    %677 = vmatpush1.msra.mxu0 0.0
    %678 = vmatprep.subr.mxu0 0.0
    %679 = vmatpush1.msra.mxu0 0.0
    %680 = vmatprep.subr.mxu0 0.0
    %681 = vmatpush1.msra.mxu0 0.0
    %682 = vmatprep.subr.mxu0 0.0
    %683 = vmatpush1.msra.mxu0 0.0
    %684 = vmatprep.subr.mxu0 0.0
    %685 = vmatpush1.msra.mxu0 0.0
    %686 = vmatprep.subr.mxu0 0.0
    %687 = vmatpush1.msra.mxu0 0.0
    %688 = vmatprep.subr.mxu0 0.0
    %689 = vmatpush1.msra.mxu0 0.0
    %690 = vmatprep.subr.mxu0 0.0
    %691 = vmatpush1.msra.mxu0 0.0
    %692 = vmatprep.subr.mxu0 0.0
    %693 = vmatpush1.msra.mxu0 0.0
    %694 = vmatprep.subr.mxu0 0.0
    %695 = vmatpush1.msra.mxu0 0.0
    %696 = vmatprep.subr.mxu0 0.0
    %697 = vmatpush1.msra.mxu0 0.0
    %698 = vmatprep.subr.mxu0 0.0
    %699 = vmatpush1.msra.mxu0 0.0
    %700 = vmatprep.subr.mxu0 0.0
    %701 = vmatpush1.msra.mxu0 0.0
    %702 = vmatprep.subr.mxu0 0.0
    %703 = vmatpush1.msra.mxu0 0.0
    %704 = vmatprep.subr.mxu0 0.0
    %705 = vmatpush1.msra.mxu0 0.0
    %706 = vmatprep.subr.mxu0 0.0
    %707 = vmatpush1.msra.mxu0 0.0
    %708 = vmatprep.subr.mxu0 0.0
    %709 = vmatpush1.msra.mxu0 0.0
    %710 = vmatprep.subr.mxu0 0.0
    %711 = vmatpush1.msra.mxu0 0.0
    %712 = vmatprep.subr.mxu0 0.0
    %713 = vmatpush1.msra.mxu0 0.0
    %714 = vmatprep.mubr.f32.mxu0 0.0
    %715 = vmatmul.mubr.f32.gmra.mrb[0].mxu0 %v648
    %v716 = vpop.f32.mrb[0].mxu0
    %v717 = vadd.f32 0.0, %v716
    %v718 = vpop.f32.mrb[0].mxu0
    %719 = vdwg.mxu0
    %v720 = vadd.f32 %v412, %v717
    %v721 = vmul.f32 %v720, %v445
    %v722 = vtanh.pop %v721
    %v723 = vmul.f32 %v722, 0.5
    %v724 = vadd.f32 %v723, 0.5
    %v725 = vmul.f32 %v724, %v638
    %727 = vrot.lane.b32.xlu0 %v722, 64
    %v728 = vpop.permute.xlu0 %727
    %v730 = vmul.f32 %v724, %v728
    %732 = vrot.lane.b32.xlu0 %v730, 32
    %v733 = vpop.permute.xlu0 %732
    %v735 = vadd.f32 %v725, %v733
    %v736 = vtanh.pop %v735
    %738 = vrot.lane.b32.xlu0 %v736, 64
    %v739 = vpop.permute.xlu0 %738
    %v741 = vmul.f32 %v724, %v739
    %743 = vrot.lane.b32.xlu0 %v741, 32
    %v744 = vpop.permute.xlu0 %743
    %v745 = vsel %vm448, %v744, 0
    %747 = vmatprep.subr.mxu0 0.0
    %748 = vmatpush1.msra.mxu0 %v58
    %749 = vmatprep.subr.mxu0 0.0
    %750 = vmatpush1.msra.mxu0 %v59
    %751 = vmatprep.subr.mxu0 0.0
    %752 = vmatpush1.msra.mxu0 %v60
    %753 = vmatprep.subr.mxu0 0.0
    %754 = vmatpush1.msra.mxu0 %v61
    %755 = vmatprep.subr.mxu0 0.0
    %756 = vmatpush1.msra.mxu0 0.0
    %757 = vmatprep.subr.mxu0 0.0
    %758 = vmatpush1.msra.mxu0 0.0
    %759 = vmatprep.subr.mxu0 0.0
    %760 = vmatpush1.msra.mxu0 0.0
    %761 = vmatprep.subr.mxu0 0.0
    %762 = vmatpush1.msra.mxu0 0.0
    %763 = vmatprep.subr.mxu0 0.0
    %764 = vmatpush1.msra.mxu0 0.0
    %765 = vmatprep.subr.mxu0 0.0
    %766 = vmatpush1.msra.mxu0 0.0
    %767 = vmatprep.subr.mxu0 0.0
    %768 = vmatpush1.msra.mxu0 0.0
    %769 = vmatprep.subr.mxu0 0.0
    %770 = vmatpush1.msra.mxu0 0.0
    %771 = vmatprep.subr.mxu0 0.0
    %772 = vmatpush1.msra.mxu0 0.0
    %773 = vmatprep.subr.mxu0 0.0
    %774 = vmatpush1.msra.mxu0 0.0
    %775 = vmatprep.subr.mxu0 0.0
    %776 = vmatpush1.msra.mxu0 0.0
    %777 = vmatprep.subr.mxu0 0.0
    %778 = vmatpush1.msra.mxu0 0.0
    %779 = vmatprep.subr.mxu0 0.0
    %780 = vmatpush1.msra.mxu0 0.0
    %781 = vmatprep.subr.mxu0 0.0
    %782 = vmatpush1.msra.mxu0 0.0
    %783 = vmatprep.subr.mxu0 0.0
    %784 = vmatpush1.msra.mxu0 0.0
    %785 = vmatprep.subr.mxu0 0.0
    %786 = vmatpush1.msra.mxu0 0.0
    %787 = vmatprep.subr.mxu0 0.0
    %788 = vmatpush1.msra.mxu0 0.0
    %789 = vmatprep.subr.mxu0 0.0
    %790 = vmatpush1.msra.mxu0 0.0
    %791 = vmatprep.subr.mxu0 0.0
    %792 = vmatpush1.msra.mxu0 0.0
    %793 = vmatprep.subr.mxu0 0.0
    %794 = vmatpush1.msra.mxu0 0.0
    %795 = vmatprep.subr.mxu0 0.0
    %796 = vmatpush1.msra.mxu0 0.0
    %797 = vmatprep.subr.mxu0 0.0
    %798 = vmatpush1.msra.mxu0 0.0
    %799 = vmatprep.subr.mxu0 0.0
    %800 = vmatpush1.msra.mxu0 0.0
    %801 = vmatprep.subr.mxu0 0.0
    %802 = vmatpush1.msra.mxu0 0.0
    %803 = vmatprep.subr.mxu0 0.0
    %804 = vmatpush1.msra.mxu0 0.0
    %805 = vmatprep.subr.mxu0 0.0
    %806 = vmatpush1.msra.mxu0 0.0
    %807 = vmatprep.subr.mxu0 0.0
    %808 = vmatpush1.msra.mxu0 0.0
    %809 = vmatprep.subr.mxu0 0.0
    %810 = vmatpush1.msra.mxu0 0.0
    %811 = vmatprep.mubr.f32.mxu0 0.0
    %812 = vmatmul.mubr.f32.gmra.mrb[0].mxu0 %v745
    %v813 = vpop.f32.mrb[0].mxu0
    %v814 = vadd.f32 0.0, %v813
    %v815 = vpop.f32.mrb[0].mxu0
    %816 = vdwg.mxu0
    %v817 = vadd.f32 %v417, %v814
    %v818 = vmul.f32 %v817, %v445
    %v819 = vtanh.pop %v818
    %v820 = vmul.f32 %v819, 0.5
    %v821 = vadd.f32 %v820, 0.5
    %v822 = vmul.f32 %v821, %v735
    %824 = vrot.lane.b32.xlu0 %v819, 64
    %v825 = vpop.permute.xlu0 %824
    %v827 = vmul.f32 %v821, %v825
    %829 = vrot.lane.b32.xlu0 %v827, 32
    %v830 = vpop.permute.xlu0 %829
    %v832 = vadd.f32 %v822, %v830
    %v833 = vtanh.pop %v832
    %835 = vrot.lane.b32.xlu0 %v833, 64
    %v836 = vpop.permute.xlu0 %835
    %v838 = vmul.f32 %v821, %v836
    %840 = vrot.lane.b32.xlu0 %v838, 32
    %v841 = vpop.permute.xlu0 %840
    %v842 = vsel %vm448, %v841, 0
    %844 = vmatprep.subr.mxu0 0.0
    %845 = vmatpush1.msra.mxu0 %v58
    %846 = vmatprep.subr.mxu0 0.0
    %847 = vmatpush1.msra.mxu0 %v59
    %848 = vmatprep.subr.mxu0 0.0
    %849 = vmatpush1.msra.mxu0 %v60
    %850 = vmatprep.subr.mxu0 0.0
    %851 = vmatpush1.msra.mxu0 %v61
    %852 = vmatprep.subr.mxu0 0.0
    %853 = vmatpush1.msra.mxu0 0.0
    %854 = vmatprep.subr.mxu0 0.0
    %855 = vmatpush1.msra.mxu0 0.0
    %856 = vmatprep.subr.mxu0 0.0
    %857 = vmatpush1.msra.mxu0 0.0
    %858 = vmatprep.subr.mxu0 0.0
    %859 = vmatpush1.msra.mxu0 0.0
    %860 = vmatprep.subr.mxu0 0.0
    %861 = vmatpush1.msra.mxu0 0.0
    %862 = vmatprep.subr.mxu0 0.0
    %863 = vmatpush1.msra.mxu0 0.0
    %864 = vmatprep.subr.mxu0 0.0
    %865 = vmatpush1.msra.mxu0 0.0
    %866 = vmatprep.subr.mxu0 0.0
    %867 = vmatpush1.msra.mxu0 0.0
    %868 = vmatprep.subr.mxu0 0.0
    %869 = vmatpush1.msra.mxu0 0.0
    %870 = vmatprep.subr.mxu0 0.0
    %871 = vmatpush1.msra.mxu0 0.0
    %872 = vmatprep.subr.mxu0 0.0
    %873 = vmatpush1.msra.mxu0 0.0
    %874 = vmatprep.subr.mxu0 0.0
    %875 = vmatpush1.msra.mxu0 0.0
    %876 = vmatprep.subr.mxu0 0.0
    %877 = vmatpush1.msra.mxu0 0.0
    %878 = vmatprep.subr.mxu0 0.0
    %879 = vmatpush1.msra.mxu0 0.0
    %880 = vmatprep.subr.mxu0 0.0
    %881 = vmatpush1.msra.mxu0 0.0
    %882 = vmatprep.subr.mxu0 0.0
    %883 = vmatpush1.msra.mxu0 0.0
    %884 = vmatprep.subr.mxu0 0.0
    %885 = vmatpush1.msra.mxu0 0.0
    %886 = vmatprep.subr.mxu0 0.0
    %887 = vmatpush1.msra.mxu0 0.0
    %888 = vmatprep.subr.mxu0 0.0
    %889 = vmatpush1.msra.mxu0 0.0
    %890 = vmatprep.subr.mxu0 0.0
    %891 = vmatpush1.msra.mxu0 0.0
    %892 = vmatprep.subr.mxu0 0.0
    %893 = vmatpush1.msra.mxu0 0.0
    %894 = vmatprep.subr.mxu0 0.0
    %895 = vmatpush1.msra.mxu0 0.0
    %896 = vmatprep.subr.mxu0 0.0
    %897 = vmatpush1.msra.mxu0 0.0
    %898 = vmatprep.subr.mxu0 0.0
    %899 = vmatpush1.msra.mxu0 0.0
    %900 = vmatprep.subr.mxu0 0.0
    %901 = vmatpush1.msra.mxu0 0.0
    %902 = vmatprep.subr.mxu0 0.0
    %903 = vmatpush1.msra.mxu0 0.0
    %904 = vmatprep.subr.mxu0 0.0
    %905 = vmatpush1.msra.mxu0 0.0
    %906 = vmatprep.subr.mxu0 0.0
    %907 = vmatpush1.msra.mxu0 0.0
    %908 = vmatprep.mubr.f32.mxu0 0.0
    %909 = vmatmul.mubr.f32.gmra.mrb[0].mxu0 %v842
    %v910 = vpop.f32.mrb[0].mxu0
    %v911 = vadd.f32 0.0, %v910
    %v912 = vpop.f32.mrb[0].mxu0
    %913 = vdwg.mxu0
    %v914 = vadd.f32 %v422, %v911
    %v915 = vmul.f32 %v914, %v445
    %v916 = vtanh.pop %v915
    %v917 = vmul.f32 %v916, 0.5
    %v918 = vadd.f32 %v917, 0.5
    %v919 = vmul.f32 %v918, %v832
    %921 = vrot.lane.b32.xlu0 %v916, 64
    %v922 = vpop.permute.xlu0 %921
    %v924 = vmul.f32 %v918, %v922
    %926 = vrot.lane.b32.xlu0 %v924, 32
    %v927 = vpop.permute.xlu0 %926
    %v929 = vadd.f32 %v919, %v927
    %v930 = vtanh.pop %v929
    %932 = vrot.lane.b32.xlu0 %v930, 64
    %v933 = vpop.permute.xlu0 %932
    %v935 = vmul.f32 %v918, %v933
    %937 = vrot.lane.b32.xlu0 %v935, 32
    %v938 = vpop.permute.xlu0 %937
    %v939 = vsel %vm448, %v938, 0
    %941 = vmatprep.subr.mxu0 0.0
    %942 = vmatpush1.msra.mxu0 %v58
    %943 = vmatprep.subr.mxu0 0.0
    %944 = vmatpush1.msra.mxu0 %v59
    %945 = vmatprep.subr.mxu0 0.0
    %946 = vmatpush1.msra.mxu0 %v60
    %947 = vmatprep.subr.mxu0 0.0
    %948 = vmatpush1.msra.mxu0 %v61
    %949 = vmatprep.subr.mxu0 0.0
    %950 = vmatpush1.msra.mxu0 0.0
    %951 = vmatprep.subr.mxu0 0.0
    %952 = vmatpush1.msra.mxu0 0.0
    %953 = vmatprep.subr.mxu0 0.0
    %954 = vmatpush1.msra.mxu0 0.0
    %955 = vmatprep.subr.mxu0 0.0
    %956 = vmatpush1.msra.mxu0 0.0
    %957 = vmatprep.subr.mxu0 0.0
    %958 = vmatpush1.msra.mxu0 0.0
    %959 = vmatprep.subr.mxu0 0.0
    %960 = vmatpush1.msra.mxu0 0.0
    %961 = vmatprep.subr.mxu0 0.0
    %962 = vmatpush1.msra.mxu0 0.0
    %963 = vmatprep.subr.mxu0 0.0
    %964 = vmatpush1.msra.mxu0 0.0
    %965 = vmatprep.subr.mxu0 0.0
    %966 = vmatpush1.msra.mxu0 0.0
    %967 = vmatprep.subr.mxu0 0.0
    %968 = vmatpush1.msra.mxu0 0.0
    %969 = vmatprep.subr.mxu0 0.0
    %970 = vmatpush1.msra.mxu0 0.0
    %971 = vmatprep.subr.mxu0 0.0
    %972 = vmatpush1.msra.mxu0 0.0
    %973 = vmatprep.subr.mxu0 0.0
    %974 = vmatpush1.msra.mxu0 0.0
    %975 = vmatprep.subr.mxu0 0.0
    %976 = vmatpush1.msra.mxu0 0.0
    %977 = vmatprep.subr.mxu0 0.0
    %978 = vmatpush1.msra.mxu0 0.0
    %979 = vmatprep.subr.mxu0 0.0
    %980 = vmatpush1.msra.mxu0 0.0
    %981 = vmatprep.subr.mxu0 0.0
    %982 = vmatpush1.msra.mxu0 0.0
    %983 = vmatprep.subr.mxu0 0.0
    %984 = vmatpush1.msra.mxu0 0.0
    %985 = vmatprep.subr.mxu0 0.0
    %986 = vmatpush1.msra.mxu0 0.0
    %987 = vmatprep.subr.mxu0 0.0
    %988 = vmatpush1.msra.mxu0 0.0
    %989 = vmatprep.subr.mxu0 0.0
    %990 = vmatpush1.msra.mxu0 0.0
    %991 = vmatprep.subr.mxu0 0.0
    %992 = vmatpush1.msra.mxu0 0.0
    %993 = vmatprep.subr.mxu0 0.0
    %994 = vmatpush1.msra.mxu0 0.0
    %995 = vmatprep.subr.mxu0 0.0
    %996 = vmatpush1.msra.mxu0 0.0
    %997 = vmatprep.subr.mxu0 0.0
    %998 = vmatpush1.msra.mxu0 0.0
    %999 = vmatprep.subr.mxu0 0.0
    %1000 = vmatpush1.msra.mxu0 0.0
    %1001 = vmatprep.subr.mxu0 0.0
    %1002 = vmatpush1.msra.mxu0 0.0
    %1003 = vmatprep.subr.mxu0 0.0
    %1004 = vmatpush1.msra.mxu0 0.0
    %1005 = vmatprep.mubr.f32.mxu0 0.0
    %1006 = vmatmul.mubr.f32.gmra.mrb[0].mxu0 %v939
    %v1007 = vpop.f32.mrb[0].mxu0
    %v1008 = vadd.f32 0.0, %v1007
    %v1009 = vpop.f32.mrb[0].mxu0
    %1010 = vdwg.mxu0
    %v1011 = vadd.f32 %v427, %v1008
    %v1012 = vmul.f32 %v1011, %v445
    %v1013 = vtanh.pop %v1012
    %v1014 = vmul.f32 %v1013, 0.5
    %v1015 = vadd.f32 %v1014, 0.5
    %v1016 = vmul.f32 %v1015, %v929
    %1018 = vrot.lane.b32.xlu0 %v1013, 64
    %v1019 = vpop.permute.xlu0 %1018
    %v1021 = vmul.f32 %v1015, %v1019
    %1023 = vrot.lane.b32.xlu0 %v1021, 32
    %v1024 = vpop.permute.xlu0 %1023
    %v1026 = vadd.f32 %v1016, %v1024
    %v1027 = vtanh.pop %v1026
    %1029 = vrot.lane.b32.xlu0 %v1027, 64
    %v1030 = vpop.permute.xlu0 %1029
    %v1032 = vmul.f32 %v1015, %v1030
    %1034 = vrot.lane.b32.xlu0 %v1032, 32
    %v1035 = vpop.permute.xlu0 %1034
    %v1036 = vsel %vm448, %v1035, 0
    %1038 = vmatprep.subr.mxu0 0.0
    %1039 = vmatpush1.msra.mxu0 %v58
    %1040 = vmatprep.subr.mxu0 0.0
    %1041 = vmatpush1.msra.mxu0 %v59
    %1042 = vmatprep.subr.mxu0 0.0
    %1043 = vmatpush1.msra.mxu0 %v60
    %1044 = vmatprep.subr.mxu0 0.0
    %1045 = vmatpush1.msra.mxu0 %v61
    %1046 = vmatprep.subr.mxu0 0.0
    %1047 = vmatpush1.msra.mxu0 0.0
    %1048 = vmatprep.subr.mxu0 0.0
    %1049 = vmatpush1.msra.mxu0 0.0
    %1050 = vmatprep.subr.mxu0 0.0
    %1051 = vmatpush1.msra.mxu0 0.0
    %1052 = vmatprep.subr.mxu0 0.0
    %1053 = vmatpush1.msra.mxu0 0.0
    %1054 = vmatprep.subr.mxu0 0.0
    %1055 = vmatpush1.msra.mxu0 0.0
    %1056 = vmatprep.subr.mxu0 0.0
    %1057 = vmatpush1.msra.mxu0 0.0
    %1058 = vmatprep.subr.mxu0 0.0
    %1059 = vmatpush1.msra.mxu0 0.0
    %1060 = vmatprep.subr.mxu0 0.0
    %1061 = vmatpush1.msra.mxu0 0.0
    %1062 = vmatprep.subr.mxu0 0.0
    %1063 = vmatpush1.msra.mxu0 0.0
    %1064 = vmatprep.subr.mxu0 0.0
    %1065 = vmatpush1.msra.mxu0 0.0
    %1066 = vmatprep.subr.mxu0 0.0
    %1067 = vmatpush1.msra.mxu0 0.0
    %1068 = vmatprep.subr.mxu0 0.0
    %1069 = vmatpush1.msra.mxu0 0.0
    %1070 = vmatprep.subr.mxu0 0.0
    %1071 = vmatpush1.msra.mxu0 0.0
    %1072 = vmatprep.subr.mxu0 0.0
    %1073 = vmatpush1.msra.mxu0 0.0
    %1074 = vmatprep.subr.mxu0 0.0
    %1075 = vmatpush1.msra.mxu0 0.0
    %1076 = vmatprep.subr.mxu0 0.0
    %1077 = vmatpush1.msra.mxu0 0.0
    %1078 = vmatprep.subr.mxu0 0.0
    %1079 = vmatpush1.msra.mxu0 0.0
    %1080 = vmatprep.subr.mxu0 0.0
    %1081 = vmatpush1.msra.mxu0 0.0
    %1082 = vmatprep.subr.mxu0 0.0
    %1083 = vmatpush1.msra.mxu0 0.0
    %1084 = vmatprep.subr.mxu0 0.0
    %1085 = vmatpush1.msra.mxu0 0.0
    %1086 = vmatprep.subr.mxu0 0.0
    %1087 = vmatpush1.msra.mxu0 0.0
    %1088 = vmatprep.subr.mxu0 0.0
    %1089 = vmatpush1.msra.mxu0 0.0
    %1090 = vmatprep.subr.mxu0 0.0
    %1091 = vmatpush1.msra.mxu0 0.0
    %1092 = vmatprep.subr.mxu0 0.0
    %1093 = vmatpush1.msra.mxu0 0.0
    %1094 = vmatprep.subr.mxu0 0.0
    %1095 = vmatpush1.msra.mxu0 0.0
    %1096 = vmatprep.subr.mxu0 0.0
    %1097 = vmatpush1.msra.mxu0 0.0
    %1098 = vmatprep.subr.mxu0 0.0
    %1099 = vmatpush1.msra.mxu0 0.0
    %1100 = vmatprep.subr.mxu0 0.0
    %1101 = vmatpush1.msra.mxu0 0.0
    %1102 = vmatprep.mubr.f32.mxu0 0.0
    %1103 = vmatmul.mubr.f32.gmra.mrb[0].mxu0 %v1036
    %v1104 = vpop.f32.mrb[0].mxu0
    %v1105 = vadd.f32 0.0, %v1104
    %v1106 = vpop.f32.mrb[0].mxu0
    %1107 = vdwg.mxu0
    %v1108 = vadd.f32 %v432, %v1105
    %v1109 = vmul.f32 %v1108, %v445
    %v1110 = vtanh.pop %v1109
    %v1111 = vmul.f32 %v1110, 0.5
    %v1112 = vadd.f32 %v1111, 0.5
    %v1113 = vmul.f32 %v1112, %v1026
    %1115 = vrot.lane.b32.xlu0 %v1110, 64
    %v1116 = vpop.permute.xlu0 %1115
    %v1118 = vmul.f32 %v1112, %v1116
    %1120 = vrot.lane.b32.xlu0 %v1118, 32
    %v1121 = vpop.permute.xlu0 %1120
    %v1123 = vadd.f32 %v1113, %v1121
    %v1124 = vtanh.pop %v1123
    %1126 = vrot.lane.b32.xlu0 %v1124, 64
    %v1127 = vpop.permute.xlu0 %1126
    %v1129 = vmul.f32 %v1112, %v1127
    %1131 = vrot.lane.b32.xlu0 %v1129, 32
    %v1132 = vpop.permute.xlu0 %1131
    %v1133 = vsel %vm448, %v1132, 0
    %1135 = vmatprep.subr.mxu0 0.0
    %1136 = vmatpush1.msra.mxu0 %v58
    %1137 = vmatprep.subr.mxu0 0.0
    %1138 = vmatpush1.msra.mxu0 %v59
    %1139 = vmatprep.subr.mxu0 0.0
    %1140 = vmatpush1.msra.mxu0 %v60
    %1141 = vmatprep.subr.mxu0 0.0
    %1142 = vmatpush1.msra.mxu0 %v61
    %1143 = vmatprep.subr.mxu0 0.0
    %1144 = vmatpush1.msra.mxu0 0.0
    %1145 = vmatprep.subr.mxu0 0.0
    %1146 = vmatpush1.msra.mxu0 0.0
    %1147 = vmatprep.subr.mxu0 0.0
    %1148 = vmatpush1.msra.mxu0 0.0
    %1149 = vmatprep.subr.mxu0 0.0
    %1150 = vmatpush1.msra.mxu0 0.0
    %1151 = vmatprep.subr.mxu0 0.0
    %1152 = vmatpush1.msra.mxu0 0.0
    %1153 = vmatprep.subr.mxu0 0.0
    %1154 = vmatpush1.msra.mxu0 0.0
    %1155 = vmatprep.subr.mxu0 0.0
    %1156 = vmatpush1.msra.mxu0 0.0
    %1157 = vmatprep.subr.mxu0 0.0
    %1158 = vmatpush1.msra.mxu0 0.0
    %1159 = vmatprep.subr.mxu0 0.0
    %1160 = vmatpush1.msra.mxu0 0.0
    %1161 = vmatprep.subr.mxu0 0.0
    %1162 = vmatpush1.msra.mxu0 0.0
    %1163 = vmatprep.subr.mxu0 0.0
    %1164 = vmatpush1.msra.mxu0 0.0
    %1165 = vmatprep.subr.mxu0 0.0
    %1166 = vmatpush1.msra.mxu0 0.0
    %1167 = vmatprep.subr.mxu0 0.0
    %1168 = vmatpush1.msra.mxu0 0.0
    %1169 = vmatprep.subr.mxu0 0.0
    %1170 = vmatpush1.msra.mxu0 0.0
    %1171 = vmatprep.subr.mxu0 0.0
    %1172 = vmatpush1.msra.mxu0 0.0
    %1173 = vmatprep.subr.mxu0 0.0
    %1174 = vmatpush1.msra.mxu0 0.0
    %1175 = vmatprep.subr.mxu0 0.0
    %1176 = vmatpush1.msra.mxu0 0.0
    %1177 = vmatprep.subr.mxu0 0.0
    %1178 = vmatpush1.msra.mxu0 0.0
    %1179 = vmatprep.subr.mxu0 0.0
    %1180 = vmatpush1.msra.mxu0 0.0
    %1181 = vmatprep.subr.mxu0 0.0
    %1182 = vmatpush1.msra.mxu0 0.0
    %1183 = vmatprep.subr.mxu0 0.0
    %1184 = vmatpush1.msra.mxu0 0.0
    %1185 = vmatprep.subr.mxu0 0.0
    %1186 = vmatpush1.msra.mxu0 0.0
    %1187 = vmatprep.subr.mxu0 0.0
    %1188 = vmatpush1.msra.mxu0 0.0
    %1189 = vmatprep.subr.mxu0 0.0
    %1190 = vmatpush1.msra.mxu0 0.0
    %1191 = vmatprep.subr.mxu0 0.0
    %1192 = vmatpush1.msra.mxu0 0.0
    %1193 = vmatprep.subr.mxu0 0.0
    %1194 = vmatpush1.msra.mxu0 0.0
    %1195 = vmatprep.subr.mxu0 0.0
    %1196 = vmatpush1.msra.mxu0 0.0
    %1197 = vmatprep.subr.mxu0 0.0
    %1198 = vmatpush1.msra.mxu0 0.0
    %1199 = vmatprep.mubr.f32.mxu0 0.0
    %1200 = vmatmul.mubr.f32.gmra.mrb[0].mxu0 %v1133
    %v1201 = vpop.f32.mrb[0].mxu0
    %v1202 = vadd.f32 0.0, %v1201
    %v1203 = vpop.f32.mrb[0].mxu0
    %1204 = vdwg.mxu0
    %v1205 = vadd.f32 %v437, %v1202
    %v1206 = vmul.f32 %v1205, %v445
    %v1207 = vtanh.pop %v1206
    %v1208 = vmul.f32 %v1207, 0.5
    %v1209 = vadd.f32 %v1208, 0.5
    %v1210 = vmul.f32 %v1209, %v1123
    %1212 = vrot.lane.b32.xlu0 %v1207, 64
    %v1213 = vpop.permute.xlu0 %1212
    %v1215 = vmul.f32 %v1209, %v1213
    %1217 = vrot.lane.b32.xlu0 %v1215, 32
    %v1218 = vpop.permute.xlu0 %1217
    %v1220 = vadd.f32 %v1210, %v1218
    %v1221 = vtanh.pop %v1220
    %1223 = vrot.lane.b32.xlu0 %v1221, 64
    %v1224 = vpop.permute.xlu0 %1223
    %v1226 = vmul.f32 %v1209, %v1224
    %v1227 = vld [vmem:[%s4] sm:$0xff]
    %v1228 = vld [vmem:[%s4 + $0x8] sm:$0xff]
    %v1229 = vld [vmem:[%s4 + $0x10] sm:$0xff]
    %v1230 = vld [vmem:[%s4 + $0x18] sm:$0xff]
    %v1231 = vld [vmem:[%s5] sm:$0x1]
    %v1233 = vlaneseq
    %v1234 = vshrl.u32 %v1233, 7
    %v1235 = vsub.s32 0, %v1234
    %v1236 = vrot.slane %v1231, %v1235
    %1239 = vrot.lane.b32.xlu0 %v1226, 32
    %v1240 = vpop.permute.xlu0 %1239
    %v1241 = vsel %vm448, %v1240, 0
    %1243 = vmatprep.subr.mxu0 0.0
    %1244 = vmatpush1.msra.mxu0 %v1227
    %1245 = vmatprep.subr.mxu0 0.0
    %1246 = vmatpush1.msra.mxu0 %v1228
    %1247 = vmatprep.subr.mxu0 0.0
    %1248 = vmatpush1.msra.mxu0 %v1229
    %1249 = vmatprep.subr.mxu0 0.0
    %1250 = vmatpush1.msra.mxu0 %v1230
    %1251 = vmatprep.subr.mxu0 0.0
    %1252 = vmatpush1.msra.mxu0 0.0
    %1253 = vmatprep.subr.mxu0 0.0
    %1254 = vmatpush1.msra.mxu0 0.0
    %1255 = vmatprep.subr.mxu0 0.0
    %1256 = vmatpush1.msra.mxu0 0.0
    %1257 = vmatprep.subr.mxu0 0.0
    %1258 = vmatpush1.msra.mxu0 0.0
    %1259 = vmatprep.subr.mxu0 0.0
    %1260 = vmatpush1.msra.mxu0 0.0
    %1261 = vmatprep.subr.mxu0 0.0
    %1262 = vmatpush1.msra.mxu0 0.0
    %1263 = vmatprep.subr.mxu0 0.0
    %1264 = vmatpush1.msra.mxu0 0.0
    %1265 = vmatprep.subr.mxu0 0.0
    %1266 = vmatpush1.msra.mxu0 0.0
    %1267 = vmatprep.subr.mxu0 0.0
    %1268 = vmatpush1.msra.mxu0 0.0
    %1269 = vmatprep.subr.mxu0 0.0
    %1270 = vmatpush1.msra.mxu0 0.0
    %1271 = vmatprep.subr.mxu0 0.0
    %1272 = vmatpush1.msra.mxu0 0.0
    %1273 = vmatprep.subr.mxu0 0.0
    %1274 = vmatpush1.msra.mxu0 0.0
    %1275 = vmatprep.subr.mxu0 0.0
    %1276 = vmatpush1.msra.mxu0 0.0
    %1277 = vmatprep.subr.mxu0 0.0
    %1278 = vmatpush1.msra.mxu0 0.0
    %1279 = vmatprep.subr.mxu0 0.0
    %1280 = vmatpush1.msra.mxu0 0.0
    %1281 = vmatprep.subr.mxu0 0.0
    %1282 = vmatpush1.msra.mxu0 0.0
    %1283 = vmatprep.subr.mxu0 0.0
    %1284 = vmatpush1.msra.mxu0 0.0
    %1285 = vmatprep.subr.mxu0 0.0
    %1286 = vmatpush1.msra.mxu0 0.0
    %1287 = vmatprep.subr.mxu0 0.0
    %1288 = vmatpush1.msra.mxu0 0.0
    %1289 = vmatprep.subr.mxu0 0.0
    %1290 = vmatpush1.msra.mxu0 0.0
    %1291 = vmatprep.subr.mxu0 0.0
    %1292 = vmatpush1.msra.mxu0 0.0
    %1293 = vmatprep.subr.mxu0 0.0
    %1294 = vmatpush1.msra.mxu0 0.0
    %1295 = vmatprep.subr.mxu0 0.0
    %1296 = vmatpush1.msra.mxu0 0.0
    %1297 = vmatprep.subr.mxu0 0.0
    %1298 = vmatpush1.msra.mxu0 0.0
    %1299 = vmatprep.subr.mxu0 0.0
    %1300 = vmatpush1.msra.mxu0 0.0
    %1301 = vmatprep.subr.mxu0 0.0
    %1302 = vmatpush1.msra.mxu0 0.0
    %1303 = vmatprep.subr.mxu0 0.0
    %1304 = vmatpush1.msra.mxu0 0.0
    %1305 = vmatprep.subr.mxu0 0.0
    %1306 = vmatpush1.msra.mxu0 0.0
    %1307 = vmatprep.mubr.f32.mxu0 0.0
    %1308 = vmatmul.mubr.f32.gmra.mrb[0].mxu0 %v551
    %v1309 = vpop.f32.mrb[0].mxu0
    %v1310 = vadd.f32 %v1236, %v1309
    %v1311 = vpop.f32.mrb[0].mxu0
    %1312 = vmatprep.mubr.f32.mxu0 0.0
    %1313 = vmatmul.mubr.f32.gmra.mrb[0].mxu0 %v648
    %v1314 = vpop.f32.mrb[0].mxu0
    %v1315 = vadd.f32 %v1236, %v1314
    %v1316 = vpop.f32.mrb[0].mxu0
    %1317 = vmatprep.mubr.f32.mxu0 0.0
    %1318 = vmatmul.mubr.f32.gmra.mrb[0].mxu0 %v745
    %v1319 = vpop.f32.mrb[0].mxu0
    %v1320 = vadd.f32 %v1236, %v1319
    %v1321 = vpop.f32.mrb[0].mxu0
    %1322 = vmatprep.mubr.f32.mxu0 0.0
    %1323 = vmatmul.mubr.f32.gmra.mrb[0].mxu0 %v842
    %v1324 = vpop.f32.mrb[0].mxu0
    %v1325 = vadd.f32 %v1236, %v1324
    %v1326 = vpop.f32.mrb[0].mxu0
    %1327 = vmatprep.mubr.f32.mxu0 0.0
    %1328 = vmatmul.mubr.f32.gmra.mrb[0].mxu0 %v939
    %v1329 = vpop.f32.mrb[0].mxu0
    %v1330 = vadd.f32 %v1236, %v1329
    %v1331 = vpop.f32.mrb[0].mxu0
    %1332 = vmatprep.mubr.f32.mxu0 0.0
    %1333 = vmatmul.mubr.f32.gmra.mrb[0].mxu0 %v1036
    %v1334 = vpop.f32.mrb[0].mxu0
    %v1335 = vadd.f32 %v1236, %v1334
    %v1336 = vpop.f32.mrb[0].mxu0
    %1337 = vmatprep.mubr.f32.mxu0 0.0
    %1338 = vmatmul.mubr.f32.gmra.mrb[0].mxu0 %v1133
    %v1339 = vpop.f32.mrb[0].mxu0
    %v1340 = vadd.f32 %v1236, %v1339
    %v1341 = vpop.f32.mrb[0].mxu0
    %1342 = vmatprep.mubr.f32.mxu0 0.0
    %1343 = vmatmul.mubr.f32.gmra.mrb[0].mxu0 %v1241
    %v1344 = vpop.f32.mrb[0].mxu0
    %v1345 = vadd.f32 %v1236, %v1344
    %v1346 = vpop.f32.mrb[0].mxu0
    %1347 = vdwg.mxu0
    %v1349 = vcombine.high %v1310, %v1310
    %v1351 = vunpack.c.l.s4 1966171168
    %v1352 = vunpack.c.0.s8 %v1351
    %v1353 = vlaneseq
    %v1354 = vshrl.u32 %v1353, 7
    %v1355 = vsub.s32 %v1352, %v1354
    %v1356 = vrot.slane %v1310, %v1355
    %v1358 = vunpack.c.l.s4 1966171168
    %v1359 = vunpack.c.0.s8 %v1358
    %v1360 = vlaneseq
    %v1361 = vshrl.u32 %v1360, 7
    %v1362 = vsub.s32 %v1359, %v1361
    %v1363 = vrot.slane %v1349, %v1362
    %v1364 = vcombine.high %v1356, %v1356
    %v1365 = vcombine.high %v1363, %v1363
    %v1367 = vunpack.c.l.s4 1966171168
    %v1368 = vunpack.c.0.s8 %v1367
    %v1369 = vlaneseq
    %v1370 = vshrl.u32 %v1369, 7
    %v1371 = vsub.s32 %v1368, %v1370
    %v1372 = vrot.slane %v1356, %v1371
    %v1374 = vunpack.c.l.s4 1966171168
    %v1375 = vunpack.c.0.s8 %v1374
    %v1376 = vlaneseq
    %v1377 = vshrl.u32 %v1376, 7
    %v1378 = vsub.s32 %v1375, %v1377
    %v1379 = vrot.slane %v1363, %v1378
    %v1381 = vunpack.c.l.s4 1966171168
    %v1382 = vunpack.c.0.s8 %v1381
    %v1383 = vlaneseq
    %v1384 = vshrl.u32 %v1383, 7
    %v1385 = vsub.s32 %v1382, %v1384
    %v1386 = vrot.slane %v1364, %v1385
    %v1388 = vunpack.c.l.s4 1966171168
    %v1389 = vunpack.c.0.s8 %v1388
    %v1390 = vlaneseq
    %v1391 = vshrl.u32 %v1390, 7
    %v1392 = vsub.s32 %v1389, %v1391
    %v1393 = vrot.slane %v1365, %v1392
    %v1394 = vcombine.high %v1372, %v1372
    %v1395 = vcombine.high %v1379, %v1379
    %v1396 = vcombine.high %v1386, %v1386
    %v1397 = vcombine.high %v1393, %v1393
    %vm1406 = vcmask 57344
    %1407 = vst.msk [vmem:[#allocation7] sm:$0x1] %vm1406, %v1372
    %1408 = vst.msk [vmem:[#allocation7 + $0x8] sm:$0x1] %vm1406, %v1386
    %1409 = vst.msk [vmem:[#allocation7 + $0x10] sm:$0x1] %vm1406, %v1394
    %1410 = vst.msk [vmem:[#allocation7 + $0x18] sm:$0x1] %vm1406, %v1396
    %1411 = vst.msk [vmem:[#allocation7 + $0x20] sm:$0x1] %vm1406, %v1379
    %1412 = vst.msk [vmem:[#allocation7 + $0x28] sm:$0x1] %vm1406, %v1393
    %1413 = vst.msk [vmem:[#allocation7 + $0x30] sm:$0x1] %vm1406, %v1395
    %1414 = vst.msk [vmem:[#allocation7 + $0x38] sm:$0x1] %vm1406, %v1397
    %v1416 = vcombine.high %v1315, %v1315
    %v1418 = vunpack.c.l.s4 1966171168
    %v1419 = vunpack.c.0.s8 %v1418
    %v1420 = vlaneseq
    %v1421 = vshrl.u32 %v1420, 7
    %v1422 = vsub.s32 %v1419, %v1421
    %v1423 = vrot.slane %v1315, %v1422
    %v1425 = vunpack.c.l.s4 1966171168
    %v1426 = vunpack.c.0.s8 %v1425
    %v1427 = vlaneseq
    %v1428 = vshrl.u32 %v1427, 7
    %v1429 = vsub.s32 %v1426, %v1428
    %v1430 = vrot.slane %v1416, %v1429
    %v1431 = vcombine.high %v1423, %v1423
    %v1432 = vcombine.high %v1430, %v1430
    %v1434 = vunpack.c.l.s4 1966171168
    %v1435 = vunpack.c.0.s8 %v1434
    %v1436 = vlaneseq
    %v1437 = vshrl.u32 %v1436, 7
    %v1438 = vsub.s32 %v1435, %v1437
    %v1439 = vrot.slane %v1423, %v1438
    %v1441 = vunpack.c.l.s4 1966171168
    %v1442 = vunpack.c.0.s8 %v1441
    %v1443 = vlaneseq
    %v1444 = vshrl.u32 %v1443, 7
    %v1445 = vsub.s32 %v1442, %v1444
    %v1446 = vrot.slane %v1430, %v1445
    %v1448 = vunpack.c.l.s4 1966171168
    %v1449 = vunpack.c.0.s8 %v1448
    %v1450 = vlaneseq
    %v1451 = vshrl.u32 %v1450, 7
    %v1452 = vsub.s32 %v1449, %v1451
    %v1453 = vrot.slane %v1431, %v1452
    %v1455 = vunpack.c.l.s4 1966171168
    %v1456 = vunpack.c.0.s8 %v1455
    %v1457 = vlaneseq
    %v1458 = vshrl.u32 %v1457, 7
    %v1459 = vsub.s32 %v1456, %v1458
    %v1460 = vrot.slane %v1432, %v1459
    %v1461 = vcombine.high %v1439, %v1439
    %v1462 = vcombine.high %v1446, %v1446
    %v1463 = vcombine.high %v1453, %v1453
    %v1464 = vcombine.high %v1460, %v1460
    %1473 = vst.msk [vmem:[#allocation7 + $0x1] sm:$0x1] %vm1406, %v1439
    %1474 = vst.msk [vmem:[#allocation7 + $0x9] sm:$0x1] %vm1406, %v1453
    %1475 = vst.msk [vmem:[#allocation7 + $0x11] sm:$0x1] %vm1406, %v1461
    %1476 = vst.msk [vmem:[#allocation7 + $0x19] sm:$0x1] %vm1406, %v1463
    %1477 = vst.msk [vmem:[#allocation7 + $0x21] sm:$0x1] %vm1406, %v1446
    %1478 = vst.msk [vmem:[#allocation7 + $0x29] sm:$0x1] %vm1406, %v1460
    %1479 = vst.msk [vmem:[#allocation7 + $0x31] sm:$0x1] %vm1406, %v1462
    %1480 = vst.msk [vmem:[#allocation7 + $0x39] sm:$0x1] %vm1406, %v1464
    %v1482 = vcombine.high %v1320, %v1320
    %v1484 = vunpack.c.l.s4 1966171168
    %v1485 = vunpack.c.0.s8 %v1484
    %v1486 = vlaneseq
    %v1487 = vshrl.u32 %v1486, 7
    %v1488 = vsub.s32 %v1485, %v1487
    %v1489 = vrot.slane %v1320, %v1488
    %v1491 = vunpack.c.l.s4 1966171168
    %v1492 = vunpack.c.0.s8 %v1491
    %v1493 = vlaneseq
    %v1494 = vshrl.u32 %v1493, 7
    %v1495 = vsub.s32 %v1492, %v1494
    %v1496 = vrot.slane %v1482, %v1495
    %v1497 = vcombine.high %v1489, %v1489
    %v1498 = vcombine.high %v1496, %v1496
    %v1500 = vunpack.c.l.s4 1966171168
    %v1501 = vunpack.c.0.s8 %v1500
    %v1502 = vlaneseq
    %v1503 = vshrl.u32 %v1502, 7
    %v1504 = vsub.s32 %v1501, %v1503
    %v1505 = vrot.slane %v1489, %v1504
    %v1507 = vunpack.c.l.s4 1966171168
    %v1508 = vunpack.c.0.s8 %v1507
    %v1509 = vlaneseq
    %v1510 = vshrl.u32 %v1509, 7
    %v1511 = vsub.s32 %v1508, %v1510
    %v1512 = vrot.slane %v1496, %v1511
    %v1514 = vunpack.c.l.s4 1966171168
    %v1515 = vunpack.c.0.s8 %v1514
    %v1516 = vlaneseq
    %v1517 = vshrl.u32 %v1516, 7
    %v1518 = vsub.s32 %v1515, %v1517
    %v1519 = vrot.slane %v1497, %v1518
    %v1521 = vunpack.c.l.s4 1966171168
    %v1522 = vunpack.c.0.s8 %v1521
    %v1523 = vlaneseq
    %v1524 = vshrl.u32 %v1523, 7
    %v1525 = vsub.s32 %v1522, %v1524
    %v1526 = vrot.slane %v1498, %v1525
    %v1527 = vcombine.high %v1505, %v1505
    %v1528 = vcombine.high %v1512, %v1512
    %v1529 = vcombine.high %v1519, %v1519
    %v1530 = vcombine.high %v1526, %v1526
    %1539 = vst.msk [vmem:[#allocation7 + $0x2] sm:$0x1] %vm1406, %v1505
    %1540 = vst.msk [vmem:[#allocation7 + $0xa] sm:$0x1] %vm1406, %v1519
    %1541 = vst.msk [vmem:[#allocation7 + $0x12] sm:$0x1] %vm1406, %v1527
    %1542 = vst.msk [vmem:[#allocation7 + $0x1a] sm:$0x1] %vm1406, %v1529
    %1543 = vst.msk [vmem:[#allocation7 + $0x22] sm:$0x1] %vm1406, %v1512
    %1544 = vst.msk [vmem:[#allocation7 + $0x2a] sm:$0x1] %vm1406, %v1526
    %1545 = vst.msk [vmem:[#allocation7 + $0x32] sm:$0x1] %vm1406, %v1528
    %1546 = vst.msk [vmem:[#allocation7 + $0x3a] sm:$0x1] %vm1406, %v1530
    %v1548 = vcombine.high %v1325, %v1325
    %v1550 = vunpack.c.l.s4 1966171168
    %v1551 = vunpack.c.0.s8 %v1550
    %v1552 = vlaneseq
    %v1553 = vshrl.u32 %v1552, 7
    %v1554 = vsub.s32 %v1551, %v1553
    %v1555 = vrot.slane %v1325, %v1554
    %v1557 = vunpack.c.l.s4 1966171168
    %v1558 = vunpack.c.0.s8 %v1557
    %v1559 = vlaneseq
    %v1560 = vshrl.u32 %v1559, 7
    %v1561 = vsub.s32 %v1558, %v1560
    %v1562 = vrot.slane %v1548, %v1561
    %v1563 = vcombine.high %v1555, %v1555
    %v1564 = vcombine.high %v1562, %v1562
    %v1566 = vunpack.c.l.s4 1966171168
    %v1567 = vunpack.c.0.s8 %v1566
    %v1568 = vlaneseq
    %v1569 = vshrl.u32 %v1568, 7
    %v1570 = vsub.s32 %v1567, %v1569
    %v1571 = vrot.slane %v1555, %v1570
    %v1573 = vunpack.c.l.s4 1966171168
    %v1574 = vunpack.c.0.s8 %v1573
    %v1575 = vlaneseq
    %v1576 = vshrl.u32 %v1575, 7
    %v1577 = vsub.s32 %v1574, %v1576
    %v1578 = vrot.slane %v1562, %v1577
    %v1580 = vunpack.c.l.s4 1966171168
    %v1581 = vunpack.c.0.s8 %v1580
    %v1582 = vlaneseq
    %v1583 = vshrl.u32 %v1582, 7
    %v1584 = vsub.s32 %v1581, %v1583
    %v1585 = vrot.slane %v1563, %v1584
    %v1587 = vunpack.c.l.s4 1966171168
    %v1588 = vunpack.c.0.s8 %v1587
    %v1589 = vlaneseq
    %v1590 = vshrl.u32 %v1589, 7
    %v1591 = vsub.s32 %v1588, %v1590
    %v1592 = vrot.slane %v1564, %v1591
    %v1593 = vcombine.high %v1571, %v1571
    %v1594 = vcombine.high %v1578, %v1578
    %v1595 = vcombine.high %v1585, %v1585
    %v1596 = vcombine.high %v1592, %v1592
    %1605 = vst.msk [vmem:[#allocation7 + $0x3] sm:$0x1] %vm1406, %v1571
    %1606 = vst.msk [vmem:[#allocation7 + $0xb] sm:$0x1] %vm1406, %v1585
    %1607 = vst.msk [vmem:[#allocation7 + $0x13] sm:$0x1] %vm1406, %v1593
    %1608 = vst.msk [vmem:[#allocation7 + $0x1b] sm:$0x1] %vm1406, %v1595
    %1609 = vst.msk [vmem:[#allocation7 + $0x23] sm:$0x1] %vm1406, %v1578
    %1610 = vst.msk [vmem:[#allocation7 + $0x2b] sm:$0x1] %vm1406, %v1592
    %1611 = vst.msk [vmem:[#allocation7 + $0x33] sm:$0x1] %vm1406, %v1594
    %1612 = vst.msk [vmem:[#allocation7 + $0x3b] sm:$0x1] %vm1406, %v1596
    %v1614 = vcombine.high %v1330, %v1330
    %v1616 = vunpack.c.l.s4 1966171168
    %v1617 = vunpack.c.0.s8 %v1616
    %v1618 = vlaneseq
    %v1619 = vshrl.u32 %v1618, 7
    %v1620 = vsub.s32 %v1617, %v1619
    %v1621 = vrot.slane %v1330, %v1620
    %v1623 = vunpack.c.l.s4 1966171168
    %v1624 = vunpack.c.0.s8 %v1623
    %v1625 = vlaneseq
    %v1626 = vshrl.u32 %v1625, 7
    %v1627 = vsub.s32 %v1624, %v1626
    %v1628 = vrot.slane %v1614, %v1627
    %v1629 = vcombine.high %v1621, %v1621
    %v1630 = vcombine.high %v1628, %v1628
    %v1632 = vunpack.c.l.s4 1966171168
    %v1633 = vunpack.c.0.s8 %v1632
    %v1634 = vlaneseq
    %v1635 = vshrl.u32 %v1634, 7
    %v1636 = vsub.s32 %v1633, %v1635
    %v1637 = vrot.slane %v1621, %v1636
    %v1639 = vunpack.c.l.s4 1966171168
    %v1640 = vunpack.c.0.s8 %v1639
    %v1641 = vlaneseq
    %v1642 = vshrl.u32 %v1641, 7
    %v1643 = vsub.s32 %v1640, %v1642
    %v1644 = vrot.slane %v1628, %v1643
    %v1646 = vunpack.c.l.s4 1966171168
    %v1647 = vunpack.c.0.s8 %v1646
    %v1648 = vlaneseq
    %v1649 = vshrl.u32 %v1648, 7
    %v1650 = vsub.s32 %v1647, %v1649
    %v1651 = vrot.slane %v1629, %v1650
    %v1653 = vunpack.c.l.s4 1966171168
    %v1654 = vunpack.c.0.s8 %v1653
    %v1655 = vlaneseq
    %v1656 = vshrl.u32 %v1655, 7
    %v1657 = vsub.s32 %v1654, %v1656
    %v1658 = vrot.slane %v1630, %v1657
    %v1659 = vcombine.high %v1637, %v1637
    %v1660 = vcombine.high %v1644, %v1644
    %v1661 = vcombine.high %v1651, %v1651
    %v1662 = vcombine.high %v1658, %v1658
    %1671 = vst.msk [vmem:[#allocation7 + $0x4] sm:$0x1] %vm1406, %v1637
    %1672 = vst.msk [vmem:[#allocation7 + $0xc] sm:$0x1] %vm1406, %v1651
    %1673 = vst.msk [vmem:[#allocation7 + $0x14] sm:$0x1] %vm1406, %v1659
    %1674 = vst.msk [vmem:[#allocation7 + $0x1c] sm:$0x1] %vm1406, %v1661
    %1675 = vst.msk [vmem:[#allocation7 + $0x24] sm:$0x1] %vm1406, %v1644
    %1676 = vst.msk [vmem:[#allocation7 + $0x2c] sm:$0x1] %vm1406, %v1658
    %1677 = vst.msk [vmem:[#allocation7 + $0x34] sm:$0x1] %vm1406, %v1660
    %1678 = vst.msk [vmem:[#allocation7 + $0x3c] sm:$0x1] %vm1406, %v1662
    %v1680 = vcombine.high %v1335, %v1335
    %v1682 = vunpack.c.l.s4 1966171168
    %v1683 = vunpack.c.0.s8 %v1682
    %v1684 = vlaneseq
    %v1685 = vshrl.u32 %v1684, 7
    %v1686 = vsub.s32 %v1683, %v1685
    %v1687 = vrot.slane %v1335, %v1686
    %v1689 = vunpack.c.l.s4 1966171168
    %v1690 = vunpack.c.0.s8 %v1689
    %v1691 = vlaneseq
    %v1692 = vshrl.u32 %v1691, 7
    %v1693 = vsub.s32 %v1690, %v1692
    %v1694 = vrot.slane %v1680, %v1693
    %v1695 = vcombine.high %v1687, %v1687
    %v1696 = vcombine.high %v1694, %v1694
    %v1698 = vunpack.c.l.s4 1966171168
    %v1699 = vunpack.c.0.s8 %v1698
    %v1700 = vlaneseq
    %v1701 = vshrl.u32 %v1700, 7
    %v1702 = vsub.s32 %v1699, %v1701
    %v1703 = vrot.slane %v1687, %v1702
    %v1705 = vunpack.c.l.s4 1966171168
    %v1706 = vunpack.c.0.s8 %v1705
    %v1707 = vlaneseq
    %v1708 = vshrl.u32 %v1707, 7
    %v1709 = vsub.s32 %v1706, %v1708
    %v1710 = vrot.slane %v1694, %v1709
    %v1712 = vunpack.c.l.s4 1966171168
    %v1713 = vunpack.c.0.s8 %v1712
    %v1714 = vlaneseq
    %v1715 = vshrl.u32 %v1714, 7
    %v1716 = vsub.s32 %v1713, %v1715
    %v1717 = vrot.slane %v1695, %v1716
    %v1719 = vunpack.c.l.s4 1966171168
    %v1720 = vunpack.c.0.s8 %v1719
    %v1721 = vlaneseq
    %v1722 = vshrl.u32 %v1721, 7
    %v1723 = vsub.s32 %v1720, %v1722
    %v1724 = vrot.slane %v1696, %v1723
    %v1725 = vcombine.high %v1703, %v1703
    %v1726 = vcombine.high %v1710, %v1710
    %v1727 = vcombine.high %v1717, %v1717
    %v1728 = vcombine.high %v1724, %v1724
    %1737 = vst.msk [vmem:[#allocation7 + $0x5] sm:$0x1] %vm1406, %v1703
    %1738 = vst.msk [vmem:[#allocation7 + $0xd] sm:$0x1] %vm1406, %v1717
    %1739 = vst.msk [vmem:[#allocation7 + $0x15] sm:$0x1] %vm1406, %v1725
    %1740 = vst.msk [vmem:[#allocation7 + $0x1d] sm:$0x1] %vm1406, %v1727
    %1741 = vst.msk [vmem:[#allocation7 + $0x25] sm:$0x1] %vm1406, %v1710
    %1742 = vst.msk [vmem:[#allocation7 + $0x2d] sm:$0x1] %vm1406, %v1724
    %1743 = vst.msk [vmem:[#allocation7 + $0x35] sm:$0x1] %vm1406, %v1726
    %1744 = vst.msk [vmem:[#allocation7 + $0x3d] sm:$0x1] %vm1406, %v1728
    %v1746 = vcombine.high %v1340, %v1340
    %v1748 = vunpack.c.l.s4 1966171168
    %v1749 = vunpack.c.0.s8 %v1748
    %v1750 = vlaneseq
    %v1751 = vshrl.u32 %v1750, 7
    %v1752 = vsub.s32 %v1749, %v1751
    %v1753 = vrot.slane %v1340, %v1752
    %v1755 = vunpack.c.l.s4 1966171168
    %v1756 = vunpack.c.0.s8 %v1755
    %v1757 = vlaneseq
    %v1758 = vshrl.u32 %v1757, 7
    %v1759 = vsub.s32 %v1756, %v1758
    %v1760 = vrot.slane %v1746, %v1759
    %v1761 = vcombine.high %v1753, %v1753
    %v1762 = vcombine.high %v1760, %v1760
    %v1764 = vunpack.c.l.s4 1966171168
    %v1765 = vunpack.c.0.s8 %v1764
    %v1766 = vlaneseq
    %v1767 = vshrl.u32 %v1766, 7
    %v1768 = vsub.s32 %v1765, %v1767
    %v1769 = vrot.slane %v1753, %v1768
    %v1771 = vunpack.c.l.s4 1966171168
    %v1772 = vunpack.c.0.s8 %v1771
    %v1773 = vlaneseq
    %v1774 = vshrl.u32 %v1773, 7
    %v1775 = vsub.s32 %v1772, %v1774
    %v1776 = vrot.slane %v1760, %v1775
    %v1778 = vunpack.c.l.s4 1966171168
    %v1779 = vunpack.c.0.s8 %v1778
    %v1780 = vlaneseq
    %v1781 = vshrl.u32 %v1780, 7
    %v1782 = vsub.s32 %v1779, %v1781
    %v1783 = vrot.slane %v1761, %v1782
    %v1785 = vunpack.c.l.s4 1966171168
    %v1786 = vunpack.c.0.s8 %v1785
    %v1787 = vlaneseq
    %v1788 = vshrl.u32 %v1787, 7
    %v1789 = vsub.s32 %v1786, %v1788
    %v1790 = vrot.slane %v1762, %v1789
    %v1791 = vcombine.high %v1769, %v1769
    %v1792 = vcombine.high %v1776, %v1776
    %v1793 = vcombine.high %v1783, %v1783
    %v1794 = vcombine.high %v1790, %v1790
    %1803 = vst.msk [vmem:[#allocation7 + $0x6] sm:$0x1] %vm1406, %v1769
    %1804 = vst.msk [vmem:[#allocation7 + $0xe] sm:$0x1] %vm1406, %v1783
    %1805 = vst.msk [vmem:[#allocation7 + $0x16] sm:$0x1] %vm1406, %v1791
    %1806 = vst.msk [vmem:[#allocation7 + $0x1e] sm:$0x1] %vm1406, %v1793
    %1807 = vst.msk [vmem:[#allocation7 + $0x26] sm:$0x1] %vm1406, %v1776
    %1808 = vst.msk [vmem:[#allocation7 + $0x2e] sm:$0x1] %vm1406, %v1790
    %1809 = vst.msk [vmem:[#allocation7 + $0x36] sm:$0x1] %vm1406, %v1792
    %1810 = vst.msk [vmem:[#allocation7 + $0x3e] sm:$0x1] %vm1406, %v1794
    %v1812 = vcombine.high %v1345, %v1345
    %v1814 = vunpack.c.l.s4 1966171168
    %v1815 = vunpack.c.0.s8 %v1814
    %v1816 = vlaneseq
    %v1817 = vshrl.u32 %v1816, 7
    %v1818 = vsub.s32 %v1815, %v1817
    %v1819 = vrot.slane %v1345, %v1818
    %v1821 = vunpack.c.l.s4 1966171168
    %v1822 = vunpack.c.0.s8 %v1821
    %v1823 = vlaneseq
    %v1824 = vshrl.u32 %v1823, 7
    %v1825 = vsub.s32 %v1822, %v1824
    %v1826 = vrot.slane %v1812, %v1825
    %v1827 = vcombine.high %v1819, %v1819
    %v1828 = vcombine.high %v1826, %v1826
    %v1830 = vunpack.c.l.s4 1966171168
    %v1831 = vunpack.c.0.s8 %v1830
    %v1832 = vlaneseq
    %v1833 = vshrl.u32 %v1832, 7
    %v1834 = vsub.s32 %v1831, %v1833
    %v1835 = vrot.slane %v1819, %v1834
    %v1837 = vunpack.c.l.s4 1966171168
    %v1838 = vunpack.c.0.s8 %v1837
    %v1839 = vlaneseq
    %v1840 = vshrl.u32 %v1839, 7
    %v1841 = vsub.s32 %v1838, %v1840
    %v1842 = vrot.slane %v1826, %v1841
    %v1844 = vunpack.c.l.s4 1966171168
    %v1845 = vunpack.c.0.s8 %v1844
    %v1846 = vlaneseq
    %v1847 = vshrl.u32 %v1846, 7
    %v1848 = vsub.s32 %v1845, %v1847
    %v1849 = vrot.slane %v1827, %v1848
    %v1851 = vunpack.c.l.s4 1966171168
    %v1852 = vunpack.c.0.s8 %v1851
    %v1853 = vlaneseq
    %v1854 = vshrl.u32 %v1853, 7
    %v1855 = vsub.s32 %v1852, %v1854
    %v1856 = vrot.slane %v1828, %v1855
    %v1857 = vcombine.high %v1835, %v1835
    %v1858 = vcombine.high %v1842, %v1842
    %v1859 = vcombine.high %v1849, %v1849
    %v1860 = vcombine.high %v1856, %v1856
    %1869 = vst.msk [vmem:[#allocation7 + $0x7] sm:$0x1] %vm1406, %v1835
    %1870 = vst.msk [vmem:[#allocation7 + $0xf] sm:$0x1] %vm1406, %v1849
    %1871 = vst.msk [vmem:[#allocation7 + $0x17] sm:$0x1] %vm1406, %v1857
    %1872 = vst.msk [vmem:[#allocation7 + $0x1f] sm:$0x1] %vm1406, %v1859
    %1873 = vst.msk [vmem:[#allocation7 + $0x27] sm:$0x1] %vm1406, %v1842
    %1874 = vst.msk [vmem:[#allocation7 + $0x2f] sm:$0x1] %vm1406, %v1856
    %1875 = vst.msk [vmem:[#allocation7 + $0x37] sm:$0x1] %vm1406, %v1858
    %1876 = vst.msk [vmem:[#allocation7 + $0x3f] sm:$0x1] %vm1406, %v1860
    // Predicated region
    $region42: #{lstm_forward.1} parent=1 // pred_check
      _
    $region43: #{lstm_forward.1} parent=1 // pred_check_branch
      %1878 = sbr.rel (0) target = $region45
    $region44: #{lstm_forward.1} parent=1 // pred_region
      %s1880 = ssub.s32 1024, 1024
      %1881 = vsyncadd [#allocation4], %s1880
      %s1882 = sshll.u32 [#allocation7], 4
      %s1883 = int_to_ptr.vmem [resolvable:$true] %s1882
      %1888 = dma.vmem_to_hbm [thread:$0]  %s1883, 1024, %s8, [#allocation4], 128, 128, 8
    $region45: #{lstm_forward.1} parent=1 // pred_fallthru
      _
    // Predicated region
    $region46: #{lstm_forward.1} parent=1 // pred_check
      _
    $region47: #{lstm_forward.1} parent=1 // pred_check_branch
      %1890 = sbr.rel (0) target = $region49
    $region48: #{lstm_forward.1} parent=1 // pred_region
      %1891 = dma.done [#allocation4], 1024
    $region49: #{lstm_forward.1} parent=1 // pred_fallthru
      _
    %1892 = vsyncpa [#allocation3], 1
    %1893 = vsyncpa [#allocation6], 1
    %1894 = vsyncpa [#allocation4], 1

</llo_original>
